<compile_context>
chip_gen: v6e
topology: v6e:2x2x1
jax: 0.10.0
libtpu: 0.0.40
codegen_flags: <defaults>
</compile_context>

<pallas_src>
import numpy as np

import jax
import jax.numpy as jnp
from jax import lax
from jax.experimental import pallas as pl
from jax.experimental.pallas import tpu as pltpu

KERNEL_SIZE = 5


def _ecg_kernel(xcol_ref, w1_ref, b1_ref, w2_ref, b2_ref,
                wfc1_ref, bfc1_ref, wfc2_ref, bfc2_ref,
                out_ref, flat_ref):
    B = out_ref.shape[0]
    K, C1, C2 = w2_ref.shape
    P2 = flat_ref.shape[1] // C2
    BP1 = xcol_ref.shape[0] // 2          # B * P1
    P1 = BP1 // B
    BP2 = B * P2                          # rows per pool-phase of conv2

    # ---- conv1 + ReLU: one MXU matmul over the im2col slab ----
    y1 = jnp.dot(xcol_ref[...], w1_ref[...],
                 preferred_element_type=jnp.float32) + b1_ref[...]
    y1 = jnp.maximum(y1, 0.0)                         # (2*B*P1, C1)
    # maxpool1: even conv positions are rows [0, B*P1), odd ones the rest.
    p1 = jnp.maximum(y1[:BP1, :], y1[BP1:, :])        # (B*P1, C1)

    # ---- conv2 + ReLU: K accumulated matmuls, batch+phase fused (M=2*B*P2)
    # p1 row layout is sigma(j)*B + b with even j first, so tap k of each
    # conv2 pool-phase is ONE contiguous slice of p1 covering both batches.
    def tap_start(j0):                    # j0 = phase + k
        return ((j0 % 2) * (P1 // 2) + (j0 // 2)) * B

    acc = None
    for k in range(K):
        lhs_k = jnp.concatenate(
            [p1[tap_start(k):tap_start(k) + BP2, :],          # even phase
             p1[tap_start(k + 1):tap_start(k + 1) + BP2, :]], # odd phase
            axis=0)                                           # (2*B*P2, C1)
        part = jnp.dot(lhs_k, w2_ref[k], preferred_element_type=jnp.float32)
        acc = part if acc is None else acc + part
    y2 = jnp.maximum(acc + b2_ref[...], 0.0)          # (2*B*P2, C2)
    # maxpool2: even/odd conv2 positions are the two contiguous halves.
    p2 = jnp.maximum(y2[:BP2, :], y2[BP2:, :])        # (B*P2, C2), row = p*B + b

    # ---- flatten: P2 full-height (B, C2) stores into a lane-dense slab ----
    for p in range(P2):
        flat_ref[:, pl.ds(p * C2, C2)] = p2[p * B:(p + 1) * B, :]

    # ---- fc1 (+ReLU) on the MXU; fc2 as VPU multiply + lane reduction ----
    h = jnp.dot(flat_ref[...], wfc1_ref[...],
                preferred_element_type=jnp.float32) + bfc1_ref[...]
    h = jnp.maximum(h, 0.0)                           # (B, H)
    out_ref[...] = (jnp.sum(h * wfc2_ref[...], axis=1, keepdims=True)
                    + bfc2_ref[...])                  # (B, 1)


def ecg_forward_pallas(x_ncl, params):
    """x_ncl: (B, in_channels, seq_len) float32 (PyTorch NCL). Returns (B, 1)."""
    B, Cin, L = x_ncl.shape
    K = KERNEL_SIZE
    L1 = L - K + 1
    P1 = L1 // 2
    L2 = P1 - K + 1
    P2 = L2 // 2
    C1 = params["conv1_w"].shape[0]
    C2 = params["conv2_w"].shape[0]
    H = params["fc1_w"].shape[0]
    assert L1 % 2 == 0 and L2 % 2 == 0, (
        "kernel assumes even conv output lengths (true for seq_len=140)")

    x_f32 = x_ncl.astype(jnp.float32)

    # --- wrapper-side im2col for conv1 (pure gather / layout plumbing) ---
    # row(phase, b, j) = phase*B*P1 + sigma(j)*B + b holds the length-K window
    # of x[b] starting at t = 2*j + phase.  sigma lists even j first so that
    # every downstream conv2 tap becomes a contiguous slice.
    rows = 2 * B * P1
    b_idx = np.empty((rows,), np.int32)
    t_idx = np.empty((rows,), np.int32)
    for phase in range(2):
        for j in range(P1):
            sig = (j // 2) if (j % 2 == 0) else (P1 // 2 + j // 2)
            for b in range(B):
                r = phase * B * P1 + sig * B + b
                b_idx[r] = b
                t_idx[r] = 2 * j + phase
    time_idx = t_idx[:, None] + np.arange(K, dtype=np.int32)[None, :]
    xg = x_f32[b_idx[:, None, None],
               np.arange(Cin, dtype=np.int32)[None, None, :],
               time_idx[:, :, None]]                  # (rows, K, Cin)
    xcol = xg.reshape(rows, K * Cin)

    # --- parameter layout transforms (plain JAX) ---
    w1 = jnp.transpose(params["conv1_w"], (2, 1, 0)).reshape(K * Cin, C1)
    b1 = params["conv1_b"].reshape(1, C1)
    w2 = jnp.transpose(params["conv2_w"], (2, 1, 0))  # (K, C1, C2)
    b2 = params["conv2_b"].reshape(1, C2)
    # PyTorch flatten is channel-major (c*P2 + p); kernel flatten is
    # time-major (p*C2 + c) -> permute fc1 weight rows accordingly.
    m1 = params["fc1_w"].T                            # (C2*P2, H)
    wfc1 = jnp.transpose(m1.reshape(C2, P2, H), (1, 0, 2)).reshape(P2 * C2, H)
    bfc1 = params["fc1_b"].reshape(1, H)
    wfc2 = params["fc2_w"].reshape(1, H)              # row vector for VPU fc2
    bfc2 = params["fc2_b"].reshape(1, 1)

    args = (xcol, w1, b1, w2, b2, wfc1, bfc1, wfc2, bfc2)
    in_specs = [pl.BlockSpec(a.shape, lambda i, _nd=a.ndim: (0,) * _nd)
                for a in args]

    flops = 2 * (rows * K * Cin * C1
                 + (2 * B * P2) * (K * C1) * C2
                 + B * (P2 * C2) * H
                 + B * H)
    bytes_accessed = 4 * (sum(int(a.size) for a in args) + B)

    return pl.pallas_call(
        _ecg_kernel,
        out_shape=jax.ShapeDtypeStruct((B, 1), jnp.float32),
        grid_spec=pltpu.PrefetchScalarGridSpec(
            num_scalar_prefetch=0,
            grid=(1,),
            in_specs=in_specs,
            out_specs=pl.BlockSpec((B, 1), lambda i: (0, 0)),
            scratch_shapes=[pltpu.VMEM((B, P2 * C2), jnp.float32)],
        ),
        compiler_params=pltpu.CompilerParams(
            dimension_semantics=("arbitrary",)),
        cost_estimate=pl.CostEstimate(flops=flops, transcendentals=0,
                                      bytes_accessed=bytes_accessed),
    )(*args)


def init_params(key, in_channels=1, seq_len=140):
    """Deterministic parameters with PyTorch-default-style uniform init."""
    K = KERNEL_SIZE
    L1 = seq_len - (K - 1)
    P1 = L1 // 2
    L2 = P1 - (K - 1)
    P2 = L2 // 2
    n_flat = 32 * P2
    ks = jax.random.split(key, 8)

    def u(k, shape, fan_in):
        bound = 1.0 / float(fan_in) ** 0.5
        return jax.random.uniform(k, shape, jnp.float32, -bound, bound)

    return {
        "conv1_w": u(ks[0], (16, in_channels, K), in_channels * K),
        "conv1_b": u(ks[1], (16,), in_channels * K),
        "conv2_w": u(ks[2], (32, 16, K), 16 * K),
        "conv2_b": u(ks[3], (32,), 16 * K),
        "fc1_w": u(ks[4], (64, n_flat), n_flat),
        "fc1_b": u(ks[5], (64,), n_flat),
        "fc2_w": u(ks[6], (1, 64), 64),
        "fc2_b": u(ks[7], (1,), 64),
    }


def ecg_forward_reference(x_ncl, p):
    """Pure-JAX reference mirroring the PyTorch forward (NCL layout)."""
    dn = ("NCH", "OIH", "NCH")
    y = lax.conv_general_dilated(x_ncl, p["conv1_w"], (1,), "VALID",
                                 dimension_numbers=dn)
    y = jax.nn.relu(y + p["conv1_b"][None, :, None])
    y = jnp.maximum(y[:, :, 0::2], y[:, :, 1::2])     # MaxPool1d(2), even L
    y = lax.conv_general_dilated(y, p["conv2_w"], (1,), "VALID",
                                 dimension_numbers=dn)
    y = jax.nn.relu(y + p["conv2_b"][None, :, None])
    y = jnp.maximum(y[:, :, 0::2], y[:, :, 1::2])
    flat = y.reshape(y.shape[0], -1)                  # channel-major flatten
    h = jax.nn.relu(flat @ p["fc1_w"].T + p["fc1_b"])
    return h @ p["fc2_w"].T + p["fc2_b"]


if __name__ == "__main__":
    key = jax.random.PRNGKey(0)
    pkey, xkey = jax.random.split(key)
    batch, in_channels, seq_len = 2, 1, 140   # module defaults; small batch

    params = init_params(pkey, in_channels, seq_len)
    x = jax.random.normal(xkey, (batch, in_channels, seq_len), jnp.float32)

    out = ecg_forward_pallas(x, params)
    out = jax.block_until_ready(out)

    ref = ecg_forward_reference(x, params)
    assert out.shape == (batch, 1), out.shape
    assert jnp.allclose(out, ref, rtol=1e-4, atol=1e-4), (out, ref)
    print("KERNEL_OK")
</pallas_src>

<mosaic_0001>
module attributes {stable_mosaic.version = 11 : i64} {
  func.func @_ecg_kernel(%arg0: i32, %arg1: memref<272x5xf32, #tpu.memory_space<vmem>>, %arg2: memref<5x16xf32, #tpu.memory_space<vmem>>, %arg3: memref<1x16xf32, #tpu.memory_space<vmem>>, %arg4: memref<5x16x32xf32, #tpu.memory_space<vmem>>, %arg5: memref<1x32xf32, #tpu.memory_space<vmem>>, %arg6: memref<1024x64xf32, #tpu.memory_space<vmem>>, %arg7: memref<1x64xf32, #tpu.memory_space<vmem>>, %arg8: memref<1x64xf32, #tpu.memory_space<vmem>>, %arg9: memref<1x1xf32, #tpu.memory_space<vmem>>, %arg10: memref<2x1xf32, #tpu.memory_space<vmem>>, %arg11: memref<2x1024xf32, #tpu.memory_space<vmem>>) attributes {dimension_semantics = [#tpu.dimension_semantics<arbitrary>], iteration_bounds = array<i64: 1>, scalar_prefetch = 0 : i64, scratch_operands = 1 : i64, tpu.core_type = #tpu.core_type<tc>, window_params = [{pipeline_mode = #tpu.pipeline_mode<synchronous>, transform_indices = @transform_0, window_bounds = array<i64: 272, 5>}, {pipeline_mode = #tpu.pipeline_mode<synchronous>, transform_indices = @transform_1, window_bounds = array<i64: 5, 16>}, {pipeline_mode = #tpu.pipeline_mode<synchronous>, transform_indices = @transform_2, window_bounds = array<i64: 1, 16>}, {pipeline_mode = #tpu.pipeline_mode<synchronous>, transform_indices = @transform_3, window_bounds = array<i64: 5, 16, 32>}, {pipeline_mode = #tpu.pipeline_mode<synchronous>, transform_indices = @transform_4, window_bounds = array<i64: 1, 32>}, {pipeline_mode = #tpu.pipeline_mode<synchronous>, transform_indices = @transform_5, window_bounds = array<i64: 1024, 64>}, {pipeline_mode = #tpu.pipeline_mode<synchronous>, transform_indices = @transform_6, window_bounds = array<i64: 1, 64>}, {pipeline_mode = #tpu.pipeline_mode<synchronous>, transform_indices = @transform_7, window_bounds = array<i64: 1, 64>}, {pipeline_mode = #tpu.pipeline_mode<synchronous>, transform_indices = @transform_8, window_bounds = array<i64: 1, 1>}, {pipeline_mode = #tpu.pipeline_mode<synchronous>, transform_indices = @transform_9, window_bounds = array<i64: 2, 1>}]} {
    %c0 = arith.constant 0 : index
    %c0_0 = arith.constant 0 : index
    %0 = vector.load %arg1[%c0, %c0_0] : memref<272x5xf32, #tpu.memory_space<vmem>>, vector<272x5xf32>
    %c0_1 = arith.constant 0 : index
    %c0_2 = arith.constant 0 : index
    %1 = vector.load %arg2[%c0_1, %c0_2] : memref<5x16xf32, #tpu.memory_space<vmem>>, vector<5x16xf32>
    %cst = arith.constant dense<0.000000e+00> : vector<272x16xf32>
    %2 = tpu.matmul %0, %1, %cst {dimension_numbers = #tpu.dot_dimension_numbers<[1], [0], [0], [1], [0, 0, 1, 1], [], []>} : vector<272x5xf32>, vector<5x16xf32>, vector<272x16xf32> -> vector<272x16xf32>
    %c0_3 = arith.constant 0 : index
    %c0_4 = arith.constant 0 : index
    %3 = vector.load %arg3[%c0_3, %c0_4] : memref<1x16xf32, #tpu.memory_space<vmem>>, vector<1x16xf32>
    %4 = vector.broadcast %3 : vector<1x16xf32> to vector<272x16xf32>
    %5 = arith.addf %2, %4 : vector<272x16xf32>
    %cst_5 = arith.constant 0.000000e+00 : f32
    %6 = vector.broadcast %cst_5 : f32 to vector<272x16xf32>
    %7 = arith.maximumf %5, %6 : vector<272x16xf32>
    %8 = vector.extract_strided_slice %7 {offsets = [0, 0], sizes = [136, 16], strides = [1, 1]} : vector<272x16xf32> to vector<136x16xf32>
    %9 = vector.extract_strided_slice %7 {offsets = [136, 0], sizes = [136, 16], strides = [1, 1]} : vector<272x16xf32> to vector<136x16xf32>
    %10 = arith.maximumf %8, %9 : vector<136x16xf32>
    %11 = vector.extract_strided_slice %10 {offsets = [0, 0], sizes = [64, 16], strides = [1, 1]} : vector<136x16xf32> to vector<64x16xf32>
    %12 = vector.extract_strided_slice %10 {offsets = [68, 0], sizes = [64, 16], strides = [1, 1]} : vector<136x16xf32> to vector<64x16xf32>
    %13 = tpu.concatenate %11, %12 in 0 : vector<64x16xf32>, vector<64x16xf32> -> vector<128x16xf32>
    %c0_6 = arith.constant 0 : index
    %c0_7 = arith.constant 0 : index
    %c0_8 = arith.constant 0 : index
    %14 = vector.load %arg4[%c0_6, %c0_7, %c0_8] : memref<5x16x32xf32, #tpu.memory_space<vmem>>, vector<1x16x32xf32>
    %15 = vector.shape_cast %14 : vector<1x16x32xf32> to vector<16x32xf32>
    %cst_9 = arith.constant dense<0.000000e+00> : vector<128x32xf32>
    %16 = tpu.matmul %13, %15, %cst_9 {dimension_numbers = #tpu.dot_dimension_numbers<[1], [0], [0], [1], [0, 0, 1, 1], [], []>} : vector<128x16xf32>, vector<16x32xf32>, vector<128x32xf32> -> vector<128x32xf32>
    %17 = vector.extract_strided_slice %10 {offsets = [68, 0], sizes = [64, 16], strides = [1, 1]} : vector<136x16xf32> to vector<64x16xf32>
    %18 = vector.extract_strided_slice %10 {offsets = [2, 0], sizes = [64, 16], strides = [1, 1]} : vector<136x16xf32> to vector<64x16xf32>
    %19 = tpu.concatenate %17, %18 in 0 : vector<64x16xf32>, vector<64x16xf32> -> vector<128x16xf32>
    %c1 = arith.constant 1 : index
    %c0_10 = arith.constant 0 : index
    %c0_11 = arith.constant 0 : index
    %20 = vector.load %arg4[%c1, %c0_10, %c0_11] : memref<5x16x32xf32, #tpu.memory_space<vmem>>, vector<1x16x32xf32>
    %21 = vector.shape_cast %20 : vector<1x16x32xf32> to vector<16x32xf32>
    %cst_12 = arith.constant dense<0.000000e+00> : vector<128x32xf32>
    %22 = tpu.matmul %19, %21, %cst_12 {dimension_numbers = #tpu.dot_dimension_numbers<[1], [0], [0], [1], [0, 0, 1, 1], [], []>} : vector<128x16xf32>, vector<16x32xf32>, vector<128x32xf32> -> vector<128x32xf32>
    %23 = arith.addf %16, %22 : vector<128x32xf32>
    %24 = vector.extract_strided_slice %10 {offsets = [2, 0], sizes = [64, 16], strides = [1, 1]} : vector<136x16xf32> to vector<64x16xf32>
    %25 = vector.extract_strided_slice %10 {offsets = [70, 0], sizes = [64, 16], strides = [1, 1]} : vector<136x16xf32> to vector<64x16xf32>
    %26 = tpu.concatenate %24, %25 in 0 : vector<64x16xf32>, vector<64x16xf32> -> vector<128x16xf32>
    %c2 = arith.constant 2 : index
    %c0_13 = arith.constant 0 : index
    %c0_14 = arith.constant 0 : index
    %27 = vector.load %arg4[%c2, %c0_13, %c0_14] : memref<5x16x32xf32, #tpu.memory_space<vmem>>, vector<1x16x32xf32>
    %28 = vector.shape_cast %27 : vector<1x16x32xf32> to vector<16x32xf32>
    %cst_15 = arith.constant dense<0.000000e+00> : vector<128x32xf32>
    %29 = tpu.matmul %26, %28, %cst_15 {dimension_numbers = #tpu.dot_dimension_numbers<[1], [0], [0], [1], [0, 0, 1, 1], [], []>} : vector<128x16xf32>, vector<16x32xf32>, vector<128x32xf32> -> vector<128x32xf32>
    %30 = arith.addf %23, %29 : vector<128x32xf32>
    %31 = vector.extract_strided_slice %10 {offsets = [70, 0], sizes = [64, 16], strides = [1, 1]} : vector<136x16xf32> to vector<64x16xf32>
    %32 = vector.extract_strided_slice %10 {offsets = [4, 0], sizes = [64, 16], strides = [1, 1]} : vector<136x16xf32> to vector<64x16xf32>
    %33 = tpu.concatenate %31, %32 in 0 : vector<64x16xf32>, vector<64x16xf32> -> vector<128x16xf32>
    %c3 = arith.constant 3 : index
    %c0_16 = arith.constant 0 : index
    %c0_17 = arith.constant 0 : index
    %34 = vector.load %arg4[%c3, %c0_16, %c0_17] : memref<5x16x32xf32, #tpu.memory_space<vmem>>, vector<1x16x32xf32>
    %35 = vector.shape_cast %34 : vector<1x16x32xf32> to vector<16x32xf32>
    %cst_18 = arith.constant dense<0.000000e+00> : vector<128x32xf32>
    %36 = tpu.matmul %33, %35, %cst_18 {dimension_numbers = #tpu.dot_dimension_numbers<[1], [0], [0], [1], [0, 0, 1, 1], [], []>} : vector<128x16xf32>, vector<16x32xf32>, vector<128x32xf32> -> vector<128x32xf32>
    %37 = arith.addf %30, %36 : vector<128x32xf32>
    %38 = vector.extract_strided_slice %10 {offsets = [4, 0], sizes = [64, 16], strides = [1, 1]} : vector<136x16xf32> to vector<64x16xf32>
    %39 = vector.extract_strided_slice %10 {offsets = [72, 0], sizes = [64, 16], strides = [1, 1]} : vector<136x16xf32> to vector<64x16xf32>
    %40 = tpu.concatenate %38, %39 in 0 : vector<64x16xf32>, vector<64x16xf32> -> vector<128x16xf32>
    %c4 = arith.constant 4 : index
    %c0_19 = arith.constant 0 : index
    %c0_20 = arith.constant 0 : index
    %41 = vector.load %arg4[%c4, %c0_19, %c0_20] : memref<5x16x32xf32, #tpu.memory_space<vmem>>, vector<1x16x32xf32>
    %42 = vector.shape_cast %41 : vector<1x16x32xf32> to vector<16x32xf32>
    %cst_21 = arith.constant dense<0.000000e+00> : vector<128x32xf32>
    %43 = tpu.matmul %40, %42, %cst_21 {dimension_numbers = #tpu.dot_dimension_numbers<[1], [0], [0], [1], [0, 0, 1, 1], [], []>} : vector<128x16xf32>, vector<16x32xf32>, vector<128x32xf32> -> vector<128x32xf32>
    %44 = arith.addf %37, %43 : vector<128x32xf32>
    %c0_22 = arith.constant 0 : index
    %c0_23 = arith.constant 0 : index
    %45 = vector.load %arg5[%c0_22, %c0_23] : memref<1x32xf32, #tpu.memory_space<vmem>>, vector<1x32xf32>
    %46 = vector.broadcast %45 : vector<1x32xf32> to vector<128x32xf32>
    %47 = arith.addf %44, %46 : vector<128x32xf32>
    %cst_24 = arith.constant 0.000000e+00 : f32
    %48 = vector.broadcast %cst_24 : f32 to vector<128x32xf32>
    %49 = arith.maximumf %47, %48 : vector<128x32xf32>
    %50 = vector.extract_strided_slice %49 {offsets = [0, 0], sizes = [64, 32], strides = [1, 1]} : vector<128x32xf32> to vector<64x32xf32>
    %51 = vector.extract_strided_slice %49 {offsets = [64, 0], sizes = [64, 32], strides = [1, 1]} : vector<128x32xf32> to vector<64x32xf32>
    %52 = arith.maximumf %50, %51 : vector<64x32xf32>
    %53 = vector.extract_strided_slice %52 {offsets = [0, 0], sizes = [2, 32], strides = [1, 1]} : vector<64x32xf32> to vector<2x32xf32>
    %c0_25 = arith.constant 0 : index
    %c0_26 = arith.constant 0 : index
    %54 = vector.load %arg11[%c0_25, %c0_26] : memref<2x1024xf32, #tpu.memory_space<vmem>>, vector<2x32xf32>
    tpu.vector_store %arg11[%c0_25, %c0_26], %53 {strides = array<i32>} : memref<2x1024xf32, #tpu.memory_space<vmem>>, vector<2x32xf32>,
    %55 = vector.extract_strided_slice %52 {offsets = [2, 0], sizes = [2, 32], strides = [1, 1]} : vector<64x32xf32> to vector<2x32xf32>
    %c0_27 = arith.constant 0 : index
    %c32 = arith.constant 32 : index
    %56 = vector.load %arg11[%c0_27, %c32] : memref<2x1024xf32, #tpu.memory_space<vmem>>, vector<2x32xf32>
    tpu.vector_store %arg11[%c0_27, %c32], %55 {strides = array<i32>} : memref<2x1024xf32, #tpu.memory_space<vmem>>, vector<2x32xf32>,
    %57 = vector.extract_strided_slice %52 {offsets = [4, 0], sizes = [2, 32], strides = [1, 1]} : vector<64x32xf32> to vector<2x32xf32>
    %c0_28 = arith.constant 0 : index
    %c64 = arith.constant 64 : index
    %58 = vector.load %arg11[%c0_28, %c64] : memref<2x1024xf32, #tpu.memory_space<vmem>>, vector<2x32xf32>
    tpu.vector_store %arg11[%c0_28, %c64], %57 {strides = array<i32>} : memref<2x1024xf32, #tpu.memory_space<vmem>>, vector<2x32xf32>,
    %59 = vector.extract_strided_slice %52 {offsets = [6, 0], sizes = [2, 32], strides = [1, 1]} : vector<64x32xf32> to vector<2x32xf32>
    %c0_29 = arith.constant 0 : index
    %c96 = arith.constant 96 : index
    %60 = vector.load %arg11[%c0_29, %c96] : memref<2x1024xf32, #tpu.memory_space<vmem>>, vector<2x32xf32>
    tpu.vector_store %arg11[%c0_29, %c96], %59 {strides = array<i32>} : memref<2x1024xf32, #tpu.memory_space<vmem>>, vector<2x32xf32>,
    %61 = vector.extract_strided_slice %52 {offsets = [8, 0], sizes = [2, 32], strides = [1, 1]} : vector<64x32xf32> to vector<2x32xf32>
    %c0_30 = arith.constant 0 : index
    %c128 = arith.constant 128 : index
    %62 = vector.load %arg11[%c0_30, %c128] : memref<2x1024xf32, #tpu.memory_space<vmem>>, vector<2x32xf32>
    tpu.vector_store %arg11[%c0_30, %c128], %61 {strides = array<i32>} : memref<2x1024xf32, #tpu.memory_space<vmem>>, vector<2x32xf32>,
    %63 = vector.extract_strided_slice %52 {offsets = [10, 0], sizes = [2, 32], strides = [1, 1]} : vector<64x32xf32> to vector<2x32xf32>
    %c0_31 = arith.constant 0 : index
    %c160 = arith.constant 160 : index
    %64 = vector.load %arg11[%c0_31, %c160] : memref<2x1024xf32, #tpu.memory_space<vmem>>, vector<2x32xf32>
    tpu.vector_store %arg11[%c0_31, %c160], %63 {strides = array<i32>} : memref<2x1024xf32, #tpu.memory_space<vmem>>, vector<2x32xf32>,
    %65 = vector.extract_strided_slice %52 {offsets = [12, 0], sizes = [2, 32], strides = [1, 1]} : vector<64x32xf32> to vector<2x32xf32>
    %c0_32 = arith.constant 0 : index
    %c192 = arith.constant 192 : index
    %66 = vector.load %arg11[%c0_32, %c192] : memref<2x1024xf32, #tpu.memory_space<vmem>>, vector<2x32xf32>
    tpu.vector_store %arg11[%c0_32, %c192], %65 {strides = array<i32>} : memref<2x1024xf32, #tpu.memory_space<vmem>>, vector<2x32xf32>,
    %67 = vector.extract_strided_slice %52 {offsets = [14, 0], sizes = [2, 32], strides = [1, 1]} : vector<64x32xf32> to vector<2x32xf32>
    %c0_33 = arith.constant 0 : index
    %c224 = arith.constant 224 : index
    %68 = vector.load %arg11[%c0_33, %c224] : memref<2x1024xf32, #tpu.memory_space<vmem>>, vector<2x32xf32>
    tpu.vector_store %arg11[%c0_33, %c224], %67 {strides = array<i32>} : memref<2x1024xf32, #tpu.memory_space<vmem>>, vector<2x32xf32>,
    %69 = vector.extract_strided_slice %52 {offsets = [16, 0], sizes = [2, 32], strides = [1, 1]} : vector<64x32xf32> to vector<2x32xf32>
    %c0_34 = arith.constant 0 : index
    %c256 = arith.constant 256 : index
    %70 = vector.load %arg11[%c0_34, %c256] : memref<2x1024xf32, #tpu.memory_space<vmem>>, vector<2x32xf32>
    tpu.vector_store %arg11[%c0_34, %c256], %69 {strides = array<i32>} : memref<2x1024xf32, #tpu.memory_space<vmem>>, vector<2x32xf32>,
    %71 = vector.extract_strided_slice %52 {offsets = [18, 0], sizes = [2, 32], strides = [1, 1]} : vector<64x32xf32> to vector<2x32xf32>
    %c0_35 = arith.constant 0 : index
    %c288 = arith.constant 288 : index
    %72 = vector.load %arg11[%c0_35, %c288] : memref<2x1024xf32, #tpu.memory_space<vmem>>, vector<2x32xf32>
    tpu.vector_store %arg11[%c0_35, %c288], %71 {strides = array<i32>} : memref<2x1024xf32, #tpu.memory_space<vmem>>, vector<2x32xf32>,
    %73 = vector.extract_strided_slice %52 {offsets = [20, 0], sizes = [2, 32], strides = [1, 1]} : vector<64x32xf32> to vector<2x32xf32>
    %c0_36 = arith.constant 0 : index
    %c320 = arith.constant 320 : index
    %74 = vector.load %arg11[%c0_36, %c320] : memref<2x1024xf32, #tpu.memory_space<vmem>>, vector<2x32xf32>
    tpu.vector_store %arg11[%c0_36, %c320], %73 {strides = array<i32>} : memref<2x1024xf32, #tpu.memory_space<vmem>>, vector<2x32xf32>,
    %75 = vector.extract_strided_slice %52 {offsets = [22, 0], sizes = [2, 32], strides = [1, 1]} : vector<64x32xf32> to vector<2x32xf32>
    %c0_37 = arith.constant 0 : index
    %c352 = arith.constant 352 : index
    %76 = vector.load %arg11[%c0_37, %c352] : memref<2x1024xf32, #tpu.memory_space<vmem>>, vector<2x32xf32>
    tpu.vector_store %arg11[%c0_37, %c352], %75 {strides = array<i32>} : memref<2x1024xf32, #tpu.memory_space<vmem>>, vector<2x32xf32>,
    %77 = vector.extract_strided_slice %52 {offsets = [24, 0], sizes = [2, 32], strides = [1, 1]} : vector<64x32xf32> to vector<2x32xf32>
    %c0_38 = arith.constant 0 : index
    %c384 = arith.constant 384 : index
    %78 = vector.load %arg11[%c0_38, %c384] : memref<2x1024xf32, #tpu.memory_space<vmem>>, vector<2x32xf32>
    tpu.vector_store %arg11[%c0_38, %c384], %77 {strides = array<i32>} : memref<2x1024xf32, #tpu.memory_space<vmem>>, vector<2x32xf32>,
    %79 = vector.extract_strided_slice %52 {offsets = [26, 0], sizes = [2, 32], strides = [1, 1]} : vector<64x32xf32> to vector<2x32xf32>
    %c0_39 = arith.constant 0 : index
    %c416 = arith.constant 416 : index
    %80 = vector.load %arg11[%c0_39, %c416] : memref<2x1024xf32, #tpu.memory_space<vmem>>, vector<2x32xf32>
    tpu.vector_store %arg11[%c0_39, %c416], %79 {strides = array<i32>} : memref<2x1024xf32, #tpu.memory_space<vmem>>, vector<2x32xf32>,
    %81 = vector.extract_strided_slice %52 {offsets = [28, 0], sizes = [2, 32], strides = [1, 1]} : vector<64x32xf32> to vector<2x32xf32>
    %c0_40 = arith.constant 0 : index
    %c448 = arith.constant 448 : index
    %82 = vector.load %arg11[%c0_40, %c448] : memref<2x1024xf32, #tpu.memory_space<vmem>>, vector<2x32xf32>
    tpu.vector_store %arg11[%c0_40, %c448], %81 {strides = array<i32>} : memref<2x1024xf32, #tpu.memory_space<vmem>>, vector<2x32xf32>,
    %83 = vector.extract_strided_slice %52 {offsets = [30, 0], sizes = [2, 32], strides = [1, 1]} : vector<64x32xf32> to vector<2x32xf32>
    %c0_41 = arith.constant 0 : index
    %c480 = arith.constant 480 : index
    %84 = vector.load %arg11[%c0_41, %c480] : memref<2x1024xf32, #tpu.memory_space<vmem>>, vector<2x32xf32>
    tpu.vector_store %arg11[%c0_41, %c480], %83 {strides = array<i32>} : memref<2x1024xf32, #tpu.memory_space<vmem>>, vector<2x32xf32>,
    %85 = vector.extract_strided_slice %52 {offsets = [32, 0], sizes = [2, 32], strides = [1, 1]} : vector<64x32xf32> to vector<2x32xf32>
    %c0_42 = arith.constant 0 : index
    %c512 = arith.constant 512 : index
    %86 = vector.load %arg11[%c0_42, %c512] : memref<2x1024xf32, #tpu.memory_space<vmem>>, vector<2x32xf32>
    tpu.vector_store %arg11[%c0_42, %c512], %85 {strides = array<i32>} : memref<2x1024xf32, #tpu.memory_space<vmem>>, vector<2x32xf32>,
    %87 = vector.extract_strided_slice %52 {offsets = [34, 0], sizes = [2, 32], strides = [1, 1]} : vector<64x32xf32> to vector<2x32xf32>
    %c0_43 = arith.constant 0 : index
    %c544 = arith.constant 544 : index
    %88 = vector.load %arg11[%c0_43, %c544] : memref<2x1024xf32, #tpu.memory_space<vmem>>, vector<2x32xf32>
    tpu.vector_store %arg11[%c0_43, %c544], %87 {strides = array<i32>} : memref<2x1024xf32, #tpu.memory_space<vmem>>, vector<2x32xf32>,
    %89 = vector.extract_strided_slice %52 {offsets = [36, 0], sizes = [2, 32], strides = [1, 1]} : vector<64x32xf32> to vector<2x32xf32>
    %c0_44 = arith.constant 0 : index
    %c576 = arith.constant 576 : index
    %90 = vector.load %arg11[%c0_44, %c576] : memref<2x1024xf32, #tpu.memory_space<vmem>>, vector<2x32xf32>
    tpu.vector_store %arg11[%c0_44, %c576], %89 {strides = array<i32>} : memref<2x1024xf32, #tpu.memory_space<vmem>>, vector<2x32xf32>,
    %91 = vector.extract_strided_slice %52 {offsets = [38, 0], sizes = [2, 32], strides = [1, 1]} : vector<64x32xf32> to vector<2x32xf32>
    %c0_45 = arith.constant 0 : index
    %c608 = arith.constant 608 : index
    %92 = vector.load %arg11[%c0_45, %c608] : memref<2x1024xf32, #tpu.memory_space<vmem>>, vector<2x32xf32>
    tpu.vector_store %arg11[%c0_45, %c608], %91 {strides = array<i32>} : memref<2x1024xf32, #tpu.memory_space<vmem>>, vector<2x32xf32>,
    %93 = vector.extract_strided_slice %52 {offsets = [40, 0], sizes = [2, 32], strides = [1, 1]} : vector<64x32xf32> to vector<2x32xf32>
    %c0_46 = arith.constant 0 : index
    %c640 = arith.constant 640 : index
    %94 = vector.load %arg11[%c0_46, %c640] : memref<2x1024xf32, #tpu.memory_space<vmem>>, vector<2x32xf32>
    tpu.vector_store %arg11[%c0_46, %c640], %93 {strides = array<i32>} : memref<2x1024xf32, #tpu.memory_space<vmem>>, vector<2x32xf32>,
    %95 = vector.extract_strided_slice %52 {offsets = [42, 0], sizes = [2, 32], strides = [1, 1]} : vector<64x32xf32> to vector<2x32xf32>
    %c0_47 = arith.constant 0 : index
    %c672 = arith.constant 672 : index
    %96 = vector.load %arg11[%c0_47, %c672] : memref<2x1024xf32, #tpu.memory_space<vmem>>, vector<2x32xf32>
    tpu.vector_store %arg11[%c0_47, %c672], %95 {strides = array<i32>} : memref<2x1024xf32, #tpu.memory_space<vmem>>, vector<2x32xf32>,
    %97 = vector.extract_strided_slice %52 {offsets = [44, 0], sizes = [2, 32], strides = [1, 1]} : vector<64x32xf32> to vector<2x32xf32>
    %c0_48 = arith.constant 0 : index
    %c704 = arith.constant 704 : index
    %98 = vector.load %arg11[%c0_48, %c704] : memref<2x1024xf32, #tpu.memory_space<vmem>>, vector<2x32xf32>
    tpu.vector_store %arg11[%c0_48, %c704], %97 {strides = array<i32>} : memref<2x1024xf32, #tpu.memory_space<vmem>>, vector<2x32xf32>,
    %99 = vector.extract_strided_slice %52 {offsets = [46, 0], sizes = [2, 32], strides = [1, 1]} : vector<64x32xf32> to vector<2x32xf32>
    %c0_49 = arith.constant 0 : index
    %c736 = arith.constant 736 : index
    %100 = vector.load %arg11[%c0_49, %c736] : memref<2x1024xf32, #tpu.memory_space<vmem>>, vector<2x32xf32>
    tpu.vector_store %arg11[%c0_49, %c736], %99 {strides = array<i32>} : memref<2x1024xf32, #tpu.memory_space<vmem>>, vector<2x32xf32>,
    %101 = vector.extract_strided_slice %52 {offsets = [48, 0], sizes = [2, 32], strides = [1, 1]} : vector<64x32xf32> to vector<2x32xf32>
    %c0_50 = arith.constant 0 : index
    %c768 = arith.constant 768 : index
    %102 = vector.load %arg11[%c0_50, %c768] : memref<2x1024xf32, #tpu.memory_space<vmem>>, vector<2x32xf32>
    tpu.vector_store %arg11[%c0_50, %c768], %101 {strides = array<i32>} : memref<2x1024xf32, #tpu.memory_space<vmem>>, vector<2x32xf32>,
    %103 = vector.extract_strided_slice %52 {offsets = [50, 0], sizes = [2, 32], strides = [1, 1]} : vector<64x32xf32> to vector<2x32xf32>
    %c0_51 = arith.constant 0 : index
    %c800 = arith.constant 800 : index
    %104 = vector.load %arg11[%c0_51, %c800] : memref<2x1024xf32, #tpu.memory_space<vmem>>, vector<2x32xf32>
    tpu.vector_store %arg11[%c0_51, %c800], %103 {strides = array<i32>} : memref<2x1024xf32, #tpu.memory_space<vmem>>, vector<2x32xf32>,
    %105 = vector.extract_strided_slice %52 {offsets = [52, 0], sizes = [2, 32], strides = [1, 1]} : vector<64x32xf32> to vector<2x32xf32>
    %c0_52 = arith.constant 0 : index
    %c832 = arith.constant 832 : index
    %106 = vector.load %arg11[%c0_52, %c832] : memref<2x1024xf32, #tpu.memory_space<vmem>>, vector<2x32xf32>
    tpu.vector_store %arg11[%c0_52, %c832], %105 {strides = array<i32>} : memref<2x1024xf32, #tpu.memory_space<vmem>>, vector<2x32xf32>,
    %107 = vector.extract_strided_slice %52 {offsets = [54, 0], sizes = [2, 32], strides = [1, 1]} : vector<64x32xf32> to vector<2x32xf32>
    %c0_53 = arith.constant 0 : index
    %c864 = arith.constant 864 : index
    %108 = vector.load %arg11[%c0_53, %c864] : memref<2x1024xf32, #tpu.memory_space<vmem>>, vector<2x32xf32>
    tpu.vector_store %arg11[%c0_53, %c864], %107 {strides = array<i32>} : memref<2x1024xf32, #tpu.memory_space<vmem>>, vector<2x32xf32>,
    %109 = vector.extract_strided_slice %52 {offsets = [56, 0], sizes = [2, 32], strides = [1, 1]} : vector<64x32xf32> to vector<2x32xf32>
    %c0_54 = arith.constant 0 : index
    %c896 = arith.constant 896 : index
    %110 = vector.load %arg11[%c0_54, %c896] : memref<2x1024xf32, #tpu.memory_space<vmem>>, vector<2x32xf32>
    tpu.vector_store %arg11[%c0_54, %c896], %109 {strides = array<i32>} : memref<2x1024xf32, #tpu.memory_space<vmem>>, vector<2x32xf32>,
    %111 = vector.extract_strided_slice %52 {offsets = [58, 0], sizes = [2, 32], strides = [1, 1]} : vector<64x32xf32> to vector<2x32xf32>
    %c0_55 = arith.constant 0 : index
    %c928 = arith.constant 928 : index
    %112 = vector.load %arg11[%c0_55, %c928] : memref<2x1024xf32, #tpu.memory_space<vmem>>, vector<2x32xf32>
    tpu.vector_store %arg11[%c0_55, %c928], %111 {strides = array<i32>} : memref<2x1024xf32, #tpu.memory_space<vmem>>, vector<2x32xf32>,
    %113 = vector.extract_strided_slice %52 {offsets = [60, 0], sizes = [2, 32], strides = [1, 1]} : vector<64x32xf32> to vector<2x32xf32>
    %c0_56 = arith.constant 0 : index
    %c960 = arith.constant 960 : index
    %114 = vector.load %arg11[%c0_56, %c960] : memref<2x1024xf32, #tpu.memory_space<vmem>>, vector<2x32xf32>
    tpu.vector_store %arg11[%c0_56, %c960], %113 {strides = array<i32>} : memref<2x1024xf32, #tpu.memory_space<vmem>>, vector<2x32xf32>,
    %115 = vector.extract_strided_slice %52 {offsets = [62, 0], sizes = [2, 32], strides = [1, 1]} : vector<64x32xf32> to vector<2x32xf32>
    %c0_57 = arith.constant 0 : index
    %c992 = arith.constant 992 : index
    %116 = vector.load %arg11[%c0_57, %c992] : memref<2x1024xf32, #tpu.memory_space<vmem>>, vector<2x32xf32>
    tpu.vector_store %arg11[%c0_57, %c992], %115 {strides = array<i32>} : memref<2x1024xf32, #tpu.memory_space<vmem>>, vector<2x32xf32>,
    %c0_58 = arith.constant 0 : index
    %c0_59 = arith.constant 0 : index
    %117 = vector.load %arg11[%c0_58, %c0_59] : memref<2x1024xf32, #tpu.memory_space<vmem>>, vector<2x1024xf32>
    %c0_60 = arith.constant 0 : index
    %c0_61 = arith.constant 0 : index
    %118 = vector.load %arg6[%c0_60, %c0_61] : memref<1024x64xf32, #tpu.memory_space<vmem>>, vector<1024x64xf32>
    %cst_62 = arith.constant dense<0.000000e+00> : vector<2x64xf32>
    %119 = tpu.matmul %117, %118, %cst_62 {dimension_numbers = #tpu.dot_dimension_numbers<[1], [0], [0], [1], [0, 0, 1, 1], [], []>} : vector<2x1024xf32>, vector<1024x64xf32>, vector<2x64xf32> -> vector<2x64xf32>
    %c0_63 = arith.constant 0 : index
    %c0_64 = arith.constant 0 : index
    %120 = vector.load %arg7[%c0_63, %c0_64] : memref<1x64xf32, #tpu.memory_space<vmem>>, vector<1x64xf32>
    %121 = vector.broadcast %120 : vector<1x64xf32> to vector<2x64xf32>
    %122 = arith.addf %119, %121 : vector<2x64xf32>
    %cst_65 = arith.constant 0.000000e+00 : f32
    %123 = vector.broadcast %cst_65 : f32 to vector<2x64xf32>
    %124 = arith.maximumf %122, %123 : vector<2x64xf32>
    %c0_66 = arith.constant 0 : index
    %c0_67 = arith.constant 0 : index
    %125 = vector.load %arg8[%c0_66, %c0_67] : memref<1x64xf32, #tpu.memory_space<vmem>>, vector<1x64xf32>
    %126 = vector.broadcast %125 : vector<1x64xf32> to vector<2x64xf32>
    %127 = arith.mulf %124, %126 : vector<2x64xf32>
    %cst_68 = arith.constant dense<0.000000e+00> : vector<2xf32>
    %128 = vector.multi_reduction <add>, %127, %cst_68 [1] : vector<2x64xf32> to vector<2xf32>
    %129 = vector.shape_cast %128 : vector<2xf32> to vector<2x1xf32>
    %c0_69 = arith.constant 0 : index
    %c0_70 = arith.constant 0 : index
    %130 = vector.load %arg9[%c0_69, %c0_70] : memref<1x1xf32, #tpu.memory_space<vmem>>, vector<1x1xf32>
    %131 = vector.broadcast %130 : vector<1x1xf32> to vector<2x1xf32>
    %132 = arith.addf %129, %131 : vector<2x1xf32>
    %c0_71 = arith.constant 0 : index
    %c0_72 = arith.constant 0 : index
    %133 = vector.load %arg10[%c0_71, %c0_72] : memref<2x1xf32, #tpu.memory_space<vmem>>, vector<2x1xf32>
    tpu.vector_store %arg10[%c0_71, %c0_72], %132 {strides = array<i32>} : memref<2x1xf32, #tpu.memory_space<vmem>>, vector<2x1xf32>,
    return
  }
  func.func @transform_0(%arg0: i32) -> (i32, i32) {
    %c0_i32 = arith.constant 0 : i32
    %c0_i32_0 = arith.constant 0 : i32
    %c0_i32_1 = arith.constant 0 : i32
    return %c0_i32, %c0_i32_0 : i32, i32
  }
  func.func @transform_1(%arg0: i32) -> (i32, i32) {
    %c0_i32 = arith.constant 0 : i32
    %c0_i32_0 = arith.constant 0 : i32
    %c0_i32_1 = arith.constant 0 : i32
    return %c0_i32, %c0_i32_0 : i32, i32
  }
  func.func @transform_2(%arg0: i32) -> (i32, i32) {
    %c0_i32 = arith.constant 0 : i32
    %c0_i32_0 = arith.constant 0 : i32
    %c0_i32_1 = arith.constant 0 : i32
    return %c0_i32, %c0_i32_0 : i32, i32
  }
  func.func @transform_3(%arg0: i32) -> (i32, i32, i32) {
    %c0_i32 = arith.constant 0 : i32
    %c0_i32_0 = arith.constant 0 : i32
    %c0_i32_1 = arith.constant 0 : i32
    %c0_i32_2 = arith.constant 0 : i32
    return %c0_i32, %c0_i32_0, %c0_i32_1 : i32, i32, i32
  }
  func.func @transform_4(%arg0: i32) -> (i32, i32) {
    %c0_i32 = arith.constant 0 : i32
    %c0_i32_0 = arith.constant 0 : i32
    %c0_i32_1 = arith.constant 0 : i32
    return %c0_i32, %c0_i32_0 : i32, i32
  }
  func.func @transform_5(%arg0: i32) -> (i32, i32) {
    %c0_i32 = arith.constant 0 : i32
    %c0_i32_0 = arith.constant 0 : i32
    %c0_i32_1 = arith.constant 0 : i32
    return %c0_i32, %c0_i32_0 : i32, i32
  }
  func.func @transform_6(%arg0: i32) -> (i32, i32) {
    %c0_i32 = arith.constant 0 : i32
    %c0_i32_0 = arith.constant 0 : i32
    %c0_i32_1 = arith.constant 0 : i32
    return %c0_i32, %c0_i32_0 : i32, i32
  }
  func.func @transform_7(%arg0: i32) -> (i32, i32) {
    %c0_i32 = arith.constant 0 : i32
    %c0_i32_0 = arith.constant 0 : i32
    %c0_i32_1 = arith.constant 0 : i32
    return %c0_i32, %c0_i32_0 : i32, i32
  }
  func.func @transform_8(%arg0: i32) -> (i32, i32) {
    %c0_i32 = arith.constant 0 : i32
    %c0_i32_0 = arith.constant 0 : i32
    %c0_i32_1 = arith.constant 0 : i32
    return %c0_i32, %c0_i32_0 : i32, i32
  }
  func.func @transform_9(%arg0: i32) -> (i32, i32) {
    %c0_i32 = arith.constant 0 : i32
    %c0_i32_0 = arith.constant 0 : i32
    %c0_i32_1 = arith.constant 0 : i32
    return %c0_i32, %c0_i32_0 : i32, i32
  }
}

</mosaic_0001>

<llo_original>
// kernel: tpu_custom_call.1
$region0: #{tpu_custom_call.1}
  #allocation0 [shape = 'u32[]', space=smem, size = 0x4, offset = 0x4, fixed_abs, tag = 'smem constant byte address 0x4 - core index']
  #allocation1 [shape = 'u32[144,128]{1,0:T(1,128)}', space=vmem, size = 0x12000, scoped, tag = 'internal scratch']
  #allocation2 [shape = 'f32[2,1024]{1,0:T(2,128)}', space=vmem, size = 0x2000, scoped, tag = 'scratch operand']
  #allocation3 [shape = 'f32[1,1]{1,0:T(1,128)S(1)}', space=vmem, size = 0x200, scoped, tag = 'scoped memory for tpu_custom_call.1']
  %s0 = inlined_call_operand.vmem [shape: f32[272,5], index: 0, kind: input, shape index: {}]
  %s1 = inlined_call_operand.vmem [shape: f32[5,16], index: 1, kind: input, shape index: {}]
  %s2 = inlined_call_operand.vmem [shape: f32[1,16], index: 2, kind: input, shape index: {}]
  %s3 = inlined_call_operand.vmem [shape: f32[5,16,32], index: 3, kind: input, shape index: {}]
  %s4 = inlined_call_operand.vmem [shape: f32[1,32], index: 4, kind: input, shape index: {}]
  %s5 = inlined_call_operand.vmem [shape: f32[1024,64], index: 5, kind: input, shape index: {}]
  %s6 = inlined_call_operand.vmem [shape: f32[1,64], index: 6, kind: input, shape index: {}]
  %s7 = inlined_call_operand.vmem [shape: f32[1,64], index: 7, kind: input, shape index: {}]
  %s8 = inlined_call_operand.<no memory space> [shape: f32[1,1], index: 8, kind: input, shape index: {}]
  %s9 = inlined_call_operand.vmem [shape: f32[2,1], index: 9, kind: output, shape index: {}]
  %s10 = sld [smem:[#allocation0]]
  $region46: #{tpu_custom_call.1} parent=0
    _
  %s12 = ssub.s32 1, %s10
  %s13 = scalar_select 0, %s12, %s10
  %v14 = vstv %s8
  %15 = vst [vmem:[#allocation3] sm:$0x1] %v14
  // Predicated region
  $region2: #{tpu_custom_call.1} parent=0 // pred_check
    _
  $region3: #{tpu_custom_call.1} parent=0 // pred_check_branch
    %17 = sbr.rel (0) target = $region5
  $region4: #{tpu_custom_call.1} parent=0 // pred_region
    _
  $region5: #{tpu_custom_call.1} parent=0 // pred_fallthru
    _
  // Predicated region
  $region6: #{tpu_custom_call.1} parent=0 // pred_check
    _
  $region7: #{tpu_custom_call.1} parent=0 // pred_check_branch
    %19 = sbr.rel (0) target = $region9
  $region8: #{tpu_custom_call.1} parent=0 // pred_region
    _
  $region9: #{tpu_custom_call.1} parent=0 // pred_fallthru
    _
  // Predicated region
  $region10: #{tpu_custom_call.1} parent=0 // pred_check
    _
  $region11: #{tpu_custom_call.1} parent=0 // pred_check_branch
    %21 = sbr.rel (0) target = $region13
  $region12: #{tpu_custom_call.1} parent=0 // pred_region
    _
  $region13: #{tpu_custom_call.1} parent=0 // pred_fallthru
    _
  // Predicated region
  $region14: #{tpu_custom_call.1} parent=0 // pred_check
    _
  $region15: #{tpu_custom_call.1} parent=0 // pred_check_branch
    %23 = sbr.rel (0) target = $region17
  $region16: #{tpu_custom_call.1} parent=0 // pred_region
    _
  $region17: #{tpu_custom_call.1} parent=0 // pred_fallthru
    _
  // Predicated region
  $region18: #{tpu_custom_call.1} parent=0 // pred_check
    _
  $region19: #{tpu_custom_call.1} parent=0 // pred_check_branch
    %25 = sbr.rel (0) target = $region21
  $region20: #{tpu_custom_call.1} parent=0 // pred_region
    _
  $region21: #{tpu_custom_call.1} parent=0 // pred_fallthru
    _
  // Predicated region
  $region22: #{tpu_custom_call.1} parent=0 // pred_check
    _
  $region23: #{tpu_custom_call.1} parent=0 // pred_check_branch
    %27 = sbr.rel (0) target = $region25
  $region24: #{tpu_custom_call.1} parent=0 // pred_region
    _
  $region25: #{tpu_custom_call.1} parent=0 // pred_fallthru
    _
  // Predicated region
  $region26: #{tpu_custom_call.1} parent=0 // pred_check
    _
  $region27: #{tpu_custom_call.1} parent=0 // pred_check_branch
    %29 = sbr.rel (0) target = $region29
  $region28: #{tpu_custom_call.1} parent=0 // pred_region
    _
  $region29: #{tpu_custom_call.1} parent=0 // pred_fallthru
    _
  // Predicated region
  $region30: #{tpu_custom_call.1} parent=0 // pred_check
    _
  $region31: #{tpu_custom_call.1} parent=0 // pred_check_branch
    %31 = sbr.rel (0) target = $region33
  $region32: #{tpu_custom_call.1} parent=0 // pred_region
    _
  $region33: #{tpu_custom_call.1} parent=0 // pred_fallthru
    _
  // Predicated region
  $region34: #{tpu_custom_call.1} parent=0 // pred_check
    _
  $region35: #{tpu_custom_call.1} parent=0 // pred_check_branch
    %33 = sbr.rel (0) target = $region37
  $region36: #{tpu_custom_call.1} parent=0 // pred_region
    _
  $region37: #{tpu_custom_call.1} parent=0 // pred_fallthru
    _
  %v34 = vld [vmem:[%s0] sm:$0xff]
  %v35 = vld [vmem:[%s0 + $0x8] sm:$0xff]
  %v36 = vld [vmem:[%s0 + $0x10] sm:$0xff]
  %v37 = vld [vmem:[%s0 + $0x18] sm:$0xff]
  %v38 = vld [vmem:[%s0 + $0x20] sm:$0xff]
  %v39 = vld [vmem:[%s0 + $0x28] sm:$0xff]
  %v40 = vld [vmem:[%s0 + $0x30] sm:$0xff]
  %v41 = vld [vmem:[%s0 + $0x38] sm:$0xff]
  %v42 = vld [vmem:[%s0 + $0x40] sm:$0xff]
  %v43 = vld [vmem:[%s0 + $0x48] sm:$0xff]
  %v44 = vld [vmem:[%s0 + $0x50] sm:$0xff]
  %v45 = vld [vmem:[%s0 + $0x58] sm:$0xff]
  %v46 = vld [vmem:[%s0 + $0x60] sm:$0xff]
  %v47 = vld [vmem:[%s0 + $0x68] sm:$0xff]
  %v48 = vld [vmem:[%s0 + $0x70] sm:$0xff]
  %v49 = vld [vmem:[%s0 + $0x78] sm:$0xff]
  %v50 = vld [vmem:[%s0 + $0x80] sm:$0xff]
  %v51 = vld [vmem:[%s0 + $0x88] sm:$0xff]
  %v52 = vld [vmem:[%s0 + $0x90] sm:$0xff]
  %v53 = vld [vmem:[%s0 + $0x98] sm:$0xff]
  %v54 = vld [vmem:[%s0 + $0xa0] sm:$0xff]
  %v55 = vld [vmem:[%s0 + $0xa8] sm:$0xff]
  %v56 = vld [vmem:[%s0 + $0xb0] sm:$0xff]
  %v57 = vld [vmem:[%s0 + $0xb8] sm:$0xff]
  %v58 = vld [vmem:[%s0 + $0xc0] sm:$0xff]
  %v59 = vld [vmem:[%s0 + $0xc8] sm:$0xff]
  %v60 = vld [vmem:[%s0 + $0xd0] sm:$0xff]
  %v61 = vld [vmem:[%s0 + $0xd8] sm:$0xff]
  %v62 = vld [vmem:[%s0 + $0xe0] sm:$0xff]
  %v63 = vld [vmem:[%s0 + $0xe8] sm:$0xff]
  %v64 = vld [vmem:[%s0 + $0xf0] sm:$0xff]
  %v65 = vld [vmem:[%s0 + $0xf8] sm:$0xff]
  %v66 = vld [vmem:[%s0 + $0x100] sm:$0xff]
  %v67 = vld [vmem:[%s0 + $0x108] sm:$0xff]
  %v68 = vld [vmem:[%s1] sm:$0x1f]
  %v69 = vld [vmem:[%s2] sm:$0x1]
  %v71 = vlaneseq
  %v72 = vshrl.u32 %v71, 7
  %v73 = vsub.s32 0, %v72
  %v74 = vrot.slane %v69, %v73
  %vm76 = vcmask 39936
  %v78 = vsel %vm76, %v34, 0
  %v81 = vsel %vm76, %v35, 0
  %v84 = vsel %vm76, %v36, 0
  %v87 = vsel %vm76, %v37, 0
  %v90 = vsel %vm76, %v38, 0
  %v93 = vsel %vm76, %v39, 0
  %v96 = vsel %vm76, %v40, 0
  %v99 = vsel %vm76, %v41, 0
  %v102 = vsel %vm76, %v42, 0
  %v105 = vsel %vm76, %v43, 0
  %v108 = vsel %vm76, %v44, 0
  %v111 = vsel %vm76, %v45, 0
  %v114 = vsel %vm76, %v46, 0
  %v117 = vsel %vm76, %v47, 0
  %v120 = vsel %vm76, %v48, 0
  %v123 = vsel %vm76, %v49, 0
  %v126 = vsel %vm76, %v50, 0
  %v129 = vsel %vm76, %v51, 0
  %v132 = vsel %vm76, %v52, 0
  %v135 = vsel %vm76, %v53, 0
  %v138 = vsel %vm76, %v54, 0
  %v141 = vsel %vm76, %v55, 0
  %v144 = vsel %vm76, %v56, 0
  %v147 = vsel %vm76, %v57, 0
  %v150 = vsel %vm76, %v58, 0
  %v153 = vsel %vm76, %v59, 0
  %v156 = vsel %vm76, %v60, 0
  %v159 = vsel %vm76, %v61, 0
  %v162 = vsel %vm76, %v62, 0
  %v165 = vsel %vm76, %v63, 0
  %v168 = vsel %vm76, %v64, 0
  %v171 = vsel %vm76, %v65, 0
  %v174 = vsel %vm76, %v66, 0
  %v177 = vsel %vm76, %v67, 0
  %vm179 = vcmask 1044480
  %v181 = vsel %vm179, %v68, 0
  %183 = vmatprep.subr.mxu0 0.0
  %184 = vmatpush1.msra.mxu0 0.0
  %185 = vmatprep.subr.mxu0 0.0
  %186 = vmatpush1.msra.mxu0 0.0
  %187 = vmatprep.subr.mxu0 0.0
  %188 = vmatpush1.msra.mxu0 0.0
  %189 = vmatprep.subr.mxu0 0.0
  %190 = vmatpush1.msra.mxu0 0.0
  %191 = vmatprep.subr.mxu0 0.0
  %192 = vmatpush1.msra.mxu0 0.0
  %193 = vmatprep.subr.mxu0 0.0
  %194 = vmatpush1.msra.mxu0 0.0
  %195 = vmatprep.subr.mxu0 0.0
  %196 = vmatpush1.msra.mxu0 0.0
  %197 = vmatprep.subr.mxu0 0.0
  %198 = vmatpush1.msra.mxu0 0.0
  %199 = vmatprep.subr.mxu0 0.0
  %200 = vmatpush1.msra.mxu0 0.0
  %201 = vmatprep.subr.mxu0 0.0
  %202 = vmatpush1.msra.mxu0 0.0
  %203 = vmatprep.subr.mxu0 0.0
  %204 = vmatpush1.msra.mxu0 0.0
  %205 = vmatprep.subr.mxu0 0.0
  %206 = vmatpush1.msra.mxu0 0.0
  %207 = vmatprep.subr.mxu0 0.0
  %208 = vmatpush1.msra.mxu0 0.0
  %209 = vmatprep.subr.mxu0 0.0
  %210 = vmatpush1.msra.mxu0 0.0
  %211 = vmatprep.subr.mxu0 0.0
  %212 = vmatpush1.msra.mxu0 0.0
  %213 = vmatprep.subr.mxu0 0.0
  %214 = vmatpush1.msra.mxu0 %v181
  %215 = vmatprep.subr.mxu0 0.0
  %216 = vmatpush2.msra.mxu0 0.0
  %217 = vmatprep.subr.mxu0 0.0
  %218 = vmatpush2.msra.mxu0 0.0
  %219 = vmatprep.subr.mxu0 0.0
  %220 = vmatpush2.msra.mxu0 0.0
  %221 = vmatprep.subr.mxu0 0.0
  %222 = vmatpush2.msra.mxu0 0.0
  %223 = vmatprep.subr.mxu0 0.0
  %224 = vmatpush2.msra.mxu0 0.0
  %225 = vmatprep.subr.mxu0 0.0
  %226 = vmatpush2.msra.mxu0 0.0
  %227 = vmatprep.subr.mxu0 0.0
  %228 = vmatpush2.msra.mxu0 0.0
  %229 = vmatprep.subr.mxu0 0.0
  %230 = vmatpush2.msra.mxu0 0.0
  %231 = vmatprep.subr.mxu0 0.0
  %232 = vmatpush2.msra.mxu0 0.0
  %233 = vmatprep.subr.mxu0 0.0
  %234 = vmatpush2.msra.mxu0 0.0
  %235 = vmatprep.subr.mxu0 0.0
  %236 = vmatpush2.msra.mxu0 0.0
  %237 = vmatprep.subr.mxu0 0.0
  %238 = vmatpush2.msra.mxu0 0.0
  %239 = vmatprep.subr.mxu0 0.0
  %240 = vmatpush2.msra.mxu0 0.0
  %241 = vmatprep.subr.mxu0 0.0
  %242 = vmatpush2.msra.mxu0 0.0
  %243 = vmatprep.subr.mxu0 0.0
  %244 = vmatpush2.msra.mxu0 0.0
  %245 = vmatprep.subr.mxu0 0.0
  %246 = vmatpush2.msra.mxu0 0.0
  %247 = vmatprep.mubr.f32.mxu0 0.0
  %248 = vmatmul.mubr.f32.gmra.mxu0 %v78
  %v249 = vpop.f32.mrf.mxu0
  %v250 = vadd.f32 %v74, %v249
  %v251 = vpop.f32.mrf.mxu0
  %252 = vmatprep.mubr.f32.mxu0 0.0
  %253 = vmatmul.mubr.f32.gmra.mxu0 %v81
  %v254 = vpop.f32.mrf.mxu0
  %v255 = vadd.f32 %v74, %v254
  %v256 = vpop.f32.mrf.mxu0
  %257 = vmatprep.mubr.f32.mxu0 0.0
  %258 = vmatmul.mubr.f32.gmra.mxu0 %v84
  %v259 = vpop.f32.mrf.mxu0
  %v260 = vadd.f32 %v74, %v259
  %v261 = vpop.f32.mrf.mxu0
  %262 = vmatprep.mubr.f32.mxu0 0.0
  %263 = vmatmul.mubr.f32.gmra.mxu0 %v87
  %v264 = vpop.f32.mrf.mxu0
  %v265 = vadd.f32 %v74, %v264
  %v266 = vpop.f32.mrf.mxu0
  %267 = vmatprep.mubr.f32.mxu0 0.0
  %268 = vmatmul.mubr.f32.gmra.mxu0 %v90
  %v269 = vpop.f32.mrf.mxu0
  %v270 = vadd.f32 %v74, %v269
  %v271 = vpop.f32.mrf.mxu0
  %272 = vmatprep.mubr.f32.mxu0 0.0
  %273 = vmatmul.mubr.f32.gmra.mxu0 %v93
  %v274 = vpop.f32.mrf.mxu0
  %v275 = vadd.f32 %v74, %v274
  %v276 = vpop.f32.mrf.mxu0
  %277 = vmatprep.mubr.f32.mxu0 0.0
  %278 = vmatmul.mubr.f32.gmra.mxu0 %v96
  %v279 = vpop.f32.mrf.mxu0
  %v280 = vadd.f32 %v74, %v279
  %v281 = vpop.f32.mrf.mxu0
  %282 = vmatprep.mubr.f32.mxu0 0.0
  %283 = vmatmul.mubr.f32.gmra.mxu0 %v99
  %v284 = vpop.f32.mrf.mxu0
  %v285 = vadd.f32 %v74, %v284
  %v286 = vpop.f32.mrf.mxu0
  %287 = vmatprep.mubr.f32.mxu0 0.0
  %288 = vmatmul.mubr.f32.gmra.mxu0 %v102
  %v289 = vpop.f32.mrf.mxu0
  %v290 = vadd.f32 %v74, %v289
  %v291 = vpop.f32.mrf.mxu0
  %292 = vmatprep.mubr.f32.mxu0 0.0
  %293 = vmatmul.mubr.f32.gmra.mxu0 %v105
  %v294 = vpop.f32.mrf.mxu0
  %v295 = vadd.f32 %v74, %v294
  %v296 = vpop.f32.mrf.mxu0
  %297 = vmatprep.mubr.f32.mxu0 0.0
  %298 = vmatmul.mubr.f32.gmra.mxu0 %v108
  %v299 = vpop.f32.mrf.mxu0
  %v300 = vadd.f32 %v74, %v299
  %v301 = vpop.f32.mrf.mxu0
  %302 = vmatprep.mubr.f32.mxu0 0.0
  %303 = vmatmul.mubr.f32.gmra.mxu0 %v111
  %v304 = vpop.f32.mrf.mxu0
  %v305 = vadd.f32 %v74, %v304
  %v306 = vpop.f32.mrf.mxu0
  %307 = vmatprep.mubr.f32.mxu0 0.0
  %308 = vmatmul.mubr.f32.gmra.mxu0 %v114
  %v309 = vpop.f32.mrf.mxu0
  %v310 = vadd.f32 %v74, %v309
  %v311 = vpop.f32.mrf.mxu0
  %312 = vmatprep.mubr.f32.mxu0 0.0
  %313 = vmatmul.mubr.f32.gmra.mxu0 %v117
  %v314 = vpop.f32.mrf.mxu0
  %v315 = vadd.f32 %v74, %v314
  %v316 = vpop.f32.mrf.mxu0
  %317 = vmatprep.mubr.f32.mxu0 0.0
  %318 = vmatmul.mubr.f32.gmra.mxu0 %v120
  %v319 = vpop.f32.mrf.mxu0
  %v320 = vadd.f32 %v74, %v319
  %v321 = vpop.f32.mrf.mxu0
  %322 = vmatprep.mubr.f32.mxu0 0.0
  %323 = vmatmul.mubr.f32.gmra.mxu0 %v123
  %v324 = vpop.f32.mrf.mxu0
  %v325 = vadd.f32 %v74, %v324
  %v326 = vpop.f32.mrf.mxu0
  %327 = vmatprep.mubr.f32.mxu0 0.0
  %328 = vmatmul.mubr.f32.gmra.mxu0 %v126
  %v329 = vpop.f32.mrf.mxu0
  %v330 = vadd.f32 %v74, %v329
  %v331 = vpop.f32.mrf.mxu0
  %332 = vmatprep.mubr.f32.mxu0 0.0
  %333 = vmatmul.mubr.f32.gmra.mxu0 %v129
  %v334 = vpop.f32.mrf.mxu0
  %v335 = vadd.f32 %v74, %v334
  %v336 = vpop.f32.mrf.mxu0
  %337 = vmatprep.mubr.f32.mxu0 0.0
  %338 = vmatmul.mubr.f32.gmra.mxu0 %v132
  %v339 = vpop.f32.mrf.mxu0
  %v340 = vadd.f32 %v74, %v339
  %v341 = vpop.f32.mrf.mxu0
  %342 = vmatprep.mubr.f32.mxu0 0.0
  %343 = vmatmul.mubr.f32.gmra.mxu0 %v135
  %v344 = vpop.f32.mrf.mxu0
  %v345 = vadd.f32 %v74, %v344
  %v346 = vpop.f32.mrf.mxu0
  %347 = vmatprep.mubr.f32.mxu0 0.0
  %348 = vmatmul.mubr.f32.gmra.mxu0 %v138
  %v349 = vpop.f32.mrf.mxu0
  %v350 = vadd.f32 %v74, %v349
  %v351 = vpop.f32.mrf.mxu0
  %352 = vmatprep.mubr.f32.mxu0 0.0
  %353 = vmatmul.mubr.f32.gmra.mxu0 %v141
  %v354 = vpop.f32.mrf.mxu0
  %v355 = vadd.f32 %v74, %v354
  %v356 = vpop.f32.mrf.mxu0
  %357 = vmatprep.mubr.f32.mxu0 0.0
  %358 = vmatmul.mubr.f32.gmra.mxu0 %v144
  %v359 = vpop.f32.mrf.mxu0
  %v360 = vadd.f32 %v74, %v359
  %v361 = vpop.f32.mrf.mxu0
  %362 = vmatprep.mubr.f32.mxu0 0.0
  %363 = vmatmul.mubr.f32.gmra.mxu0 %v147
  %v364 = vpop.f32.mrf.mxu0
  %v365 = vadd.f32 %v74, %v364
  %v366 = vpop.f32.mrf.mxu0
  %367 = vmatprep.mubr.f32.mxu0 0.0
  %368 = vmatmul.mubr.f32.gmra.mxu0 %v150
  %v369 = vpop.f32.mrf.mxu0
  %v370 = vadd.f32 %v74, %v369
  %v371 = vpop.f32.mrf.mxu0
  %372 = vmatprep.mubr.f32.mxu0 0.0
  %373 = vmatmul.mubr.f32.gmra.mxu0 %v153
  %v374 = vpop.f32.mrf.mxu0
  %v375 = vadd.f32 %v74, %v374
  %v376 = vpop.f32.mrf.mxu0
  %377 = vmatprep.mubr.f32.mxu0 0.0
  %378 = vmatmul.mubr.f32.gmra.mxu0 %v156
  %v379 = vpop.f32.mrf.mxu0
  %v380 = vadd.f32 %v74, %v379
  %v381 = vpop.f32.mrf.mxu0
  %382 = vmatprep.mubr.f32.mxu0 0.0
  %383 = vmatmul.mubr.f32.gmra.mxu0 %v159
  %v384 = vpop.f32.mrf.mxu0
  %v385 = vadd.f32 %v74, %v384
  %v386 = vpop.f32.mrf.mxu0
  %387 = vmatprep.mubr.f32.mxu0 0.0
  %388 = vmatmul.mubr.f32.gmra.mxu0 %v162
  %v389 = vpop.f32.mrf.mxu0
  %v390 = vadd.f32 %v74, %v389
  %v391 = vpop.f32.mrf.mxu0
  %392 = vmatprep.mubr.f32.mxu0 0.0
  %393 = vmatmul.mubr.f32.gmra.mxu0 %v165
  %v394 = vpop.f32.mrf.mxu0
  %v395 = vadd.f32 %v74, %v394
  %v396 = vpop.f32.mrf.mxu0
  %397 = vmatprep.mubr.f32.mxu0 0.0
  %398 = vmatmul.mubr.f32.gmra.mxu0 %v168
  %v399 = vpop.f32.mrf.mxu0
  %v400 = vadd.f32 %v74, %v399
  %v401 = vpop.f32.mrf.mxu0
  %402 = vmatprep.mubr.f32.mxu0 0.0
  %403 = vmatmul.mubr.f32.gmra.mxu0 %v171
  %v404 = vpop.f32.mrf.mxu0
  %v405 = vadd.f32 %v74, %v404
  %v406 = vpop.f32.mrf.mxu0
  %407 = vmatprep.mubr.f32.mxu0 0.0
  %408 = vmatmul.mubr.f32.gmra.mxu0 %v174
  %v409 = vpop.f32.mrf.mxu0
  %v410 = vadd.f32 %v74, %v409
  %v411 = vpop.f32.mrf.mxu0
  %412 = vmatprep.mubr.f32.mxu0 0.0
  %413 = vmatmul.mubr.f32.gmra.mxu0 %v177
  %v414 = vpop.f32.mrf.mxu0
  %v415 = vadd.f32 %v74, %v414
  %v416 = vpop.f32.mrf.mxu0
  %417 = vdwg.mxu0
  %v418 = vmax.f32 %v250, 0.0
  %v419 = vmax.f32 %v255, 0.0
  %v420 = vmax.f32 %v260, 0.0
  %v421 = vmax.f32 %v265, 0.0
  %v422 = vmax.f32 %v270, 0.0
  %v423 = vmax.f32 %v275, 0.0
  %v424 = vmax.f32 %v280, 0.0
  %v425 = vmax.f32 %v285, 0.0
  %v426 = vmax.f32 %v290, 0.0
  %v427 = vmax.f32 %v295, 0.0
  %v428 = vmax.f32 %v300, 0.0
  %v429 = vmax.f32 %v305, 0.0
  %v430 = vmax.f32 %v310, 0.0
  %v431 = vmax.f32 %v315, 0.0
  %v432 = vmax.f32 %v320, 0.0
  %v433 = vmax.f32 %v325, 0.0
  %v434 = vmax.f32 %v330, 0.0
  %v435 = vmax.f32 %v335, 0.0
  %v436 = vmax.f32 %v340, 0.0
  %v437 = vmax.f32 %v345, 0.0
  %v438 = vmax.f32 %v350, 0.0
  %v439 = vmax.f32 %v355, 0.0
  %v440 = vmax.f32 %v360, 0.0
  %v441 = vmax.f32 %v365, 0.0
  %v442 = vmax.f32 %v370, 0.0
  %v443 = vmax.f32 %v375, 0.0
  %v444 = vmax.f32 %v380, 0.0
  %v445 = vmax.f32 %v385, 0.0
  %v446 = vmax.f32 %v390, 0.0
  %v447 = vmax.f32 %v395, 0.0
  %v448 = vmax.f32 %v400, 0.0
  %v449 = vmax.f32 %v405, 0.0
  %v450 = vmax.f32 %v410, 0.0
  %v451 = vmax.f32 %v415, 0.0
  %v452 = vmax.f32 %v418, %v435
  %v453 = vmax.f32 %v419, %v436
  %v454 = vmax.f32 %v420, %v437
  %v455 = vmax.f32 %v421, %v438
  %v456 = vmax.f32 %v422, %v439
  %v457 = vmax.f32 %v423, %v440
  %v458 = vmax.f32 %v424, %v441
  %v459 = vmax.f32 %v425, %v442
  %v460 = vmax.f32 %v426, %v443
  %v461 = vmax.f32 %v427, %v444
  %v462 = vmax.f32 %v428, %v445
  %v463 = vmax.f32 %v429, %v446
  %v464 = vmax.f32 %v430, %v447
  %v465 = vmax.f32 %v431, %v448
  %v466 = vmax.f32 %v432, %v449
  %v467 = vmax.f32 %v433, %v450
  %v468 = vmax.f32 %v434, %v451
  %vm478 = vcmask 1043456
  %v479 = vrot.slane %v460, 4
  %v480 = vrot.slane %v461, 4
  %v481 = vsel %vm478, %v479, %v480
  %v482 = vrot.slane %v462, 4
  %v483 = vsel %vm478, %v480, %v482
  %v484 = vrot.slane %v463, 4
  %v485 = vsel %vm478, %v482, %v484
  %v486 = vrot.slane %v464, 4
  %v487 = vsel %vm478, %v484, %v486
  %v488 = vrot.slane %v465, 4
  %v489 = vsel %vm478, %v486, %v488
  %v490 = vrot.slane %v466, 4
  %v491 = vsel %vm478, %v488, %v490
  %v492 = vrot.slane %v467, 4
  %v493 = vsel %vm478, %v490, %v492
  %v494 = vrot.slane %v468, 4
  %v495 = vsel %vm478, %v492, %v494
  %v496 = vld [vmem:[%s3] sm:$0xff]
  %v497 = vld [vmem:[%s3 + $0x8] sm:$0xff]
  %vm506 = vcmask 1045504
  %v507 = vrot.slane %v452, 2
  %v508 = vrot.slane %v453, 2
  %v509 = vsel %vm506, %v507, %v508
  %v510 = vrot.slane %v454, 2
  %v511 = vsel %vm506, %v508, %v510
  %v512 = vrot.slane %v455, 2
  %v513 = vsel %vm506, %v510, %v512
  %v514 = vrot.slane %v456, 2
  %v515 = vsel %vm506, %v512, %v514
  %v516 = vrot.slane %v457, 2
  %v517 = vsel %vm506, %v514, %v516
  %v518 = vrot.slane %v458, 2
  %v519 = vsel %vm506, %v516, %v518
  %v520 = vrot.slane %v459, 2
  %v521 = vsel %vm506, %v518, %v520
  %v522 = vrot.slane %v460, 2
  %v523 = vsel %vm506, %v520, %v522
  %s524 = scalar_lea.vmem %s3, 16
  %v525 = vld [vmem:[%s524] sm:$0xff]
  %v526 = vld [vmem:[%s524 + $0x8] sm:$0xff]
  %vm527 = vcmask 130048
  %v528 = vsel %vm527, %v481, 0
  %v530 = vsel %vm527, %v483, 0
  %v532 = vsel %vm527, %v485, 0
  %v534 = vsel %vm527, %v487, 0
  %v536 = vsel %vm527, %v489, 0
  %v538 = vsel %vm527, %v491, 0
  %v540 = vsel %vm527, %v493, 0
  %v542 = vsel %vm527, %v495, 0
  %v544 = vsel %vm527, %v509, 0
  %v546 = vsel %vm527, %v511, 0
  %v548 = vsel %vm527, %v513, 0
  %v550 = vsel %vm527, %v515, 0
  %v552 = vsel %vm527, %v517, 0
  %v554 = vsel %vm527, %v519, 0
  %v556 = vsel %vm527, %v521, 0
  %v558 = vsel %vm527, %v523, 0
  %560 = vmatprep.subr.mxu0 0.0
  %561 = vmatpush1.msra.mxu0 0.0
  %562 = vmatprep.subr.mxu0 0.0
  %563 = vmatpush1.msra.mxu0 0.0
  %564 = vmatprep.subr.mxu0 0.0
  %565 = vmatpush1.msra.mxu0 0.0
  %566 = vmatprep.subr.mxu0 0.0
  %567 = vmatpush1.msra.mxu0 0.0
  %568 = vmatprep.subr.mxu0 0.0
  %569 = vmatpush1.msra.mxu0 0.0
  %570 = vmatprep.subr.mxu0 0.0
  %571 = vmatpush1.msra.mxu0 0.0
  %572 = vmatprep.subr.mxu0 0.0
  %573 = vmatpush1.msra.mxu0 0.0
  %574 = vmatprep.subr.mxu0 0.0
  %575 = vmatpush1.msra.mxu0 0.0
  %576 = vmatprep.subr.mxu0 0.0
  %577 = vmatpush1.msra.mxu0 0.0
  %578 = vmatprep.subr.mxu0 0.0
  %579 = vmatpush1.msra.mxu0 0.0
  %580 = vmatprep.subr.mxu0 0.0
  %581 = vmatpush1.msra.mxu0 0.0
  %582 = vmatprep.subr.mxu0 0.0
  %583 = vmatpush1.msra.mxu0 0.0
  %584 = vmatprep.subr.mxu0 0.0
  %585 = vmatpush1.msra.mxu0 0.0
  %586 = vmatprep.subr.mxu0 0.0
  %587 = vmatpush1.msra.mxu0 0.0
  %588 = vmatprep.subr.mxu0 0.0
  %589 = vmatpush1.msra.mxu0 %v526
  %590 = vmatprep.subr.mxu0 0.0
  %591 = vmatpush1.msra.mxu0 %v525
  %592 = vmatprep.subr.mxu0 0.0
  %593 = vmatpush2.msra.mxu0 0.0
  %594 = vmatprep.subr.mxu0 0.0
  %595 = vmatpush2.msra.mxu0 0.0
  %596 = vmatprep.subr.mxu0 0.0
  %597 = vmatpush2.msra.mxu0 0.0
  %598 = vmatprep.subr.mxu0 0.0
  %599 = vmatpush2.msra.mxu0 0.0
  %600 = vmatprep.subr.mxu0 0.0
  %601 = vmatpush2.msra.mxu0 0.0
  %602 = vmatprep.subr.mxu0 0.0
  %603 = vmatpush2.msra.mxu0 0.0
  %604 = vmatprep.subr.mxu0 0.0
  %605 = vmatpush2.msra.mxu0 0.0
  %606 = vmatprep.subr.mxu0 0.0
  %607 = vmatpush2.msra.mxu0 0.0
  %608 = vmatprep.subr.mxu0 0.0
  %609 = vmatpush2.msra.mxu0 0.0
  %610 = vmatprep.subr.mxu0 0.0
  %611 = vmatpush2.msra.mxu0 0.0
  %612 = vmatprep.subr.mxu0 0.0
  %613 = vmatpush2.msra.mxu0 0.0
  %614 = vmatprep.subr.mxu0 0.0
  %615 = vmatpush2.msra.mxu0 0.0
  %616 = vmatprep.subr.mxu0 0.0
  %617 = vmatpush2.msra.mxu0 0.0
  %618 = vmatprep.subr.mxu0 0.0
  %619 = vmatpush2.msra.mxu0 0.0
  %620 = vmatprep.subr.mxu0 0.0
  %621 = vmatpush2.msra.mxu0 0.0
  %622 = vmatprep.subr.mxu0 0.0
  %623 = vmatpush2.msra.mxu0 0.0
  %624 = vmatprep.mubr.f32.mxu0 0.0
  %625 = vmatmul.mubr.f32.gmra.mxu0 %v528
  %v626 = vpop.f32.mrf.mxu0
  %v627 = vadd.f32 0.0, %v626
  %v628 = vpop.f32.mrf.mxu0
  %629 = vmatprep.mubr.f32.mxu0 0.0
  %630 = vmatmul.mubr.f32.gmra.mxu0 %v530
  %v631 = vpop.f32.mrf.mxu0
  %v632 = vadd.f32 0.0, %v631
  %v633 = vpop.f32.mrf.mxu0
  %634 = vmatprep.mubr.f32.mxu0 0.0
  %635 = vmatmul.mubr.f32.gmra.mxu0 %v532
  %v636 = vpop.f32.mrf.mxu0
  %v637 = vadd.f32 0.0, %v636
  %v638 = vpop.f32.mrf.mxu0
  %639 = vmatprep.mubr.f32.mxu0 0.0
  %640 = vmatmul.mubr.f32.gmra.mxu0 %v534
  %v641 = vpop.f32.mrf.mxu0
  %v642 = vadd.f32 0.0, %v641
  %v643 = vpop.f32.mrf.mxu0
  %644 = vmatprep.mubr.f32.mxu0 0.0
  %645 = vmatmul.mubr.f32.gmra.mxu0 %v536
  %v646 = vpop.f32.mrf.mxu0
  %v647 = vadd.f32 0.0, %v646
  %v648 = vpop.f32.mrf.mxu0
  %649 = vmatprep.mubr.f32.mxu0 0.0
  %650 = vmatmul.mubr.f32.gmra.mxu0 %v538
  %v651 = vpop.f32.mrf.mxu0
  %v652 = vadd.f32 0.0, %v651
  %v653 = vpop.f32.mrf.mxu0
  %654 = vmatprep.mubr.f32.mxu0 0.0
  %655 = vmatmul.mubr.f32.gmra.mxu0 %v540
  %v656 = vpop.f32.mrf.mxu0
  %v657 = vadd.f32 0.0, %v656
  %v658 = vpop.f32.mrf.mxu0
  %659 = vmatprep.mubr.f32.mxu0 0.0
  %660 = vmatmul.mubr.f32.gmra.mxu0 %v542
  %v661 = vpop.f32.mrf.mxu0
  %v662 = vadd.f32 0.0, %v661
  %v663 = vpop.f32.mrf.mxu0
  %664 = vmatprep.mubr.f32.mxu0 0.0
  %665 = vmatmul.mubr.f32.gmra.mxu0 %v544
  %v666 = vpop.f32.mrf.mxu0
  %v667 = vadd.f32 0.0, %v666
  %v668 = vpop.f32.mrf.mxu0
  %669 = vmatprep.mubr.f32.mxu0 0.0
  %670 = vmatmul.mubr.f32.gmra.mxu0 %v546
  %v671 = vpop.f32.mrf.mxu0
  %v672 = vadd.f32 0.0, %v671
  %v673 = vpop.f32.mrf.mxu0
  %674 = vmatprep.mubr.f32.mxu0 0.0
  %675 = vmatmul.mubr.f32.gmra.mxu0 %v548
  %v676 = vpop.f32.mrf.mxu0
  %v677 = vadd.f32 0.0, %v676
  %v678 = vpop.f32.mrf.mxu0
  %679 = vmatprep.mubr.f32.mxu0 0.0
  %680 = vmatmul.mubr.f32.gmra.mxu0 %v550
  %v681 = vpop.f32.mrf.mxu0
  %v682 = vadd.f32 0.0, %v681
  %v683 = vpop.f32.mrf.mxu0
  %684 = vmatprep.mubr.f32.mxu0 0.0
  %685 = vmatmul.mubr.f32.gmra.mxu0 %v552
  %v686 = vpop.f32.mrf.mxu0
  %v687 = vadd.f32 0.0, %v686
  %v688 = vpop.f32.mrf.mxu0
  %689 = vmatprep.mubr.f32.mxu0 0.0
  %690 = vmatmul.mubr.f32.gmra.mxu0 %v554
  %v691 = vpop.f32.mrf.mxu0
  %v692 = vadd.f32 0.0, %v691
  %v693 = vpop.f32.mrf.mxu0
  %694 = vmatprep.mubr.f32.mxu0 0.0
  %695 = vmatmul.mubr.f32.gmra.mxu0 %v556
  %v696 = vpop.f32.mrf.mxu0
  %v697 = vadd.f32 0.0, %v696
  %v698 = vpop.f32.mrf.mxu0
  %699 = vmatprep.mubr.f32.mxu0 0.0
  %700 = vmatmul.mubr.f32.gmra.mxu0 %v558
  %v701 = vpop.f32.mrf.mxu0
  %v702 = vadd.f32 0.0, %v701
  %v703 = vpop.f32.mrf.mxu0
  %704 = vdwg.mxu0
  %v705 = vsel %vm527, %v452, 0
  %v707 = vsel %vm527, %v453, 0
  %v709 = vsel %vm527, %v454, 0
  %v711 = vsel %vm527, %v455, 0
  %v713 = vsel %vm527, %v456, 0
  %v715 = vsel %vm527, %v457, 0
  %v717 = vsel %vm527, %v458, 0
  %v719 = vsel %vm527, %v459, 0
  %721 = vmatprep.subr.mxu0 0.0
  %722 = vmatpush1.msra.mxu0 0.0
  %723 = vmatprep.subr.mxu0 0.0
  %724 = vmatpush1.msra.mxu0 0.0
  %725 = vmatprep.subr.mxu0 0.0
  %726 = vmatpush1.msra.mxu0 0.0
  %727 = vmatprep.subr.mxu0 0.0
  %728 = vmatpush1.msra.mxu0 0.0
  %729 = vmatprep.subr.mxu0 0.0
  %730 = vmatpush1.msra.mxu0 0.0
  %731 = vmatprep.subr.mxu0 0.0
  %732 = vmatpush1.msra.mxu0 0.0
  %733 = vmatprep.subr.mxu0 0.0
  %734 = vmatpush1.msra.mxu0 0.0
  %735 = vmatprep.subr.mxu0 0.0
  %736 = vmatpush1.msra.mxu0 0.0
  %737 = vmatprep.subr.mxu0 0.0
  %738 = vmatpush1.msra.mxu0 0.0
  %739 = vmatprep.subr.mxu0 0.0
  %740 = vmatpush1.msra.mxu0 0.0
  %741 = vmatprep.subr.mxu0 0.0
  %742 = vmatpush1.msra.mxu0 0.0
  %743 = vmatprep.subr.mxu0 0.0
  %744 = vmatpush1.msra.mxu0 0.0
  %745 = vmatprep.subr.mxu0 0.0
  %746 = vmatpush1.msra.mxu0 0.0
  %747 = vmatprep.subr.mxu0 0.0
  %748 = vmatpush1.msra.mxu0 0.0
  %749 = vmatprep.subr.mxu0 0.0
  %750 = vmatpush1.msra.mxu0 %v497
  %751 = vmatprep.subr.mxu0 0.0
  %752 = vmatpush1.msra.mxu0 %v496
  %753 = vmatprep.subr.mxu0 0.0
  %754 = vmatpush2.msra.mxu0 0.0
  %755 = vmatprep.subr.mxu0 0.0
  %756 = vmatpush2.msra.mxu0 0.0
  %757 = vmatprep.subr.mxu0 0.0
  %758 = vmatpush2.msra.mxu0 0.0
  %759 = vmatprep.subr.mxu0 0.0
  %760 = vmatpush2.msra.mxu0 0.0
  %761 = vmatprep.subr.mxu0 0.0
  %762 = vmatpush2.msra.mxu0 0.0
  %763 = vmatprep.subr.mxu0 0.0
  %764 = vmatpush2.msra.mxu0 0.0
  %765 = vmatprep.subr.mxu0 0.0
  %766 = vmatpush2.msra.mxu0 0.0
  %767 = vmatprep.subr.mxu0 0.0
  %768 = vmatpush2.msra.mxu0 0.0
  %769 = vmatprep.subr.mxu0 0.0
  %770 = vmatpush2.msra.mxu0 0.0
  %771 = vmatprep.subr.mxu0 0.0
  %772 = vmatpush2.msra.mxu0 0.0
  %773 = vmatprep.subr.mxu0 0.0
  %774 = vmatpush2.msra.mxu0 0.0
  %775 = vmatprep.subr.mxu0 0.0
  %776 = vmatpush2.msra.mxu0 0.0
  %777 = vmatprep.subr.mxu0 0.0
  %778 = vmatpush2.msra.mxu0 0.0
  %779 = vmatprep.subr.mxu0 0.0
  %780 = vmatpush2.msra.mxu0 0.0
  %781 = vmatprep.subr.mxu0 0.0
  %782 = vmatpush2.msra.mxu0 0.0
  %783 = vmatprep.subr.mxu0 0.0
  %784 = vmatpush2.msra.mxu0 0.0
  %785 = vmatprep.mubr.f32.mxu0 0.0
  %786 = vmatmul.mubr.f32.gmra.mxu0 %v705
  %v787 = vpop.f32.mrf.mxu0
  %v788 = vadd.f32 %v627, %v787
  %v789 = vpop.f32.mrf.mxu0
  %790 = vmatprep.mubr.f32.mxu0 0.0
  %791 = vmatmul.mubr.f32.gmra.mxu0 %v707
  %v792 = vpop.f32.mrf.mxu0
  %v793 = vadd.f32 %v632, %v792
  %v794 = vpop.f32.mrf.mxu0
  %795 = vmatprep.mubr.f32.mxu0 0.0
  %796 = vmatmul.mubr.f32.gmra.mxu0 %v709
  %v797 = vpop.f32.mrf.mxu0
  %v798 = vadd.f32 %v637, %v797
  %v799 = vpop.f32.mrf.mxu0
  %800 = vmatprep.mubr.f32.mxu0 0.0
  %801 = vmatmul.mubr.f32.gmra.mxu0 %v711
  %v802 = vpop.f32.mrf.mxu0
  %v803 = vadd.f32 %v642, %v802
  %v804 = vpop.f32.mrf.mxu0
  %805 = vmatprep.mubr.f32.mxu0 0.0
  %806 = vmatmul.mubr.f32.gmra.mxu0 %v713
  %v807 = vpop.f32.mrf.mxu0
  %v808 = vadd.f32 %v647, %v807
  %v809 = vpop.f32.mrf.mxu0
  %810 = vmatprep.mubr.f32.mxu0 0.0
  %811 = vmatmul.mubr.f32.gmra.mxu0 %v715
  %v812 = vpop.f32.mrf.mxu0
  %v813 = vadd.f32 %v652, %v812
  %v814 = vpop.f32.mrf.mxu0
  %815 = vmatprep.mubr.f32.mxu0 0.0
  %816 = vmatmul.mubr.f32.gmra.mxu0 %v717
  %v817 = vpop.f32.mrf.mxu0
  %v818 = vadd.f32 %v657, %v817
  %v819 = vpop.f32.mrf.mxu0
  %820 = vmatprep.mubr.f32.mxu0 0.0
  %821 = vmatmul.mubr.f32.gmra.mxu0 %v719
  %v822 = vpop.f32.mrf.mxu0
  %v823 = vadd.f32 %v662, %v822
  %v824 = vpop.f32.mrf.mxu0
  %825 = vmatprep.mubr.f32.mxu0 0.0
  %826 = vmatmul.mubr.f32.gmra.mxu0 %v528
  %v827 = vpop.f32.mrf.mxu0
  %v828 = vadd.f32 %v667, %v827
  %v829 = vpop.f32.mrf.mxu0
  %830 = vmatprep.mubr.f32.mxu0 0.0
  %831 = vmatmul.mubr.f32.gmra.mxu0 %v530
  %v832 = vpop.f32.mrf.mxu0
  %v833 = vadd.f32 %v672, %v832
  %v834 = vpop.f32.mrf.mxu0
  %835 = vmatprep.mubr.f32.mxu0 0.0
  %836 = vmatmul.mubr.f32.gmra.mxu0 %v532
  %v837 = vpop.f32.mrf.mxu0
  %v838 = vadd.f32 %v677, %v837
  %v839 = vpop.f32.mrf.mxu0
  %840 = vmatprep.mubr.f32.mxu0 0.0
  %841 = vmatmul.mubr.f32.gmra.mxu0 %v534
  %v842 = vpop.f32.mrf.mxu0
  %v843 = vadd.f32 %v682, %v842
  %v844 = vpop.f32.mrf.mxu0
  %845 = vmatprep.mubr.f32.mxu0 0.0
  %846 = vmatmul.mubr.f32.gmra.mxu0 %v536
  %v847 = vpop.f32.mrf.mxu0
  %v848 = vadd.f32 %v687, %v847
  %v849 = vpop.f32.mrf.mxu0
  %850 = vmatprep.mubr.f32.mxu0 0.0
  %851 = vmatmul.mubr.f32.gmra.mxu0 %v538
  %v852 = vpop.f32.mrf.mxu0
  %v853 = vadd.f32 %v692, %v852
  %v854 = vpop.f32.mrf.mxu0
  %855 = vmatprep.mubr.f32.mxu0 0.0
  %856 = vmatmul.mubr.f32.gmra.mxu0 %v540
  %v857 = vpop.f32.mrf.mxu0
  %v858 = vadd.f32 %v697, %v857
  %v859 = vpop.f32.mrf.mxu0
  %860 = vmatprep.mubr.f32.mxu0 0.0
  %861 = vmatmul.mubr.f32.gmra.mxu0 %v542
  %v862 = vpop.f32.mrf.mxu0
  %v863 = vadd.f32 %v702, %v862
  %v864 = vpop.f32.mrf.mxu0
  %865 = vdwg.mxu0
  %vm866 = vcmask 1041408
  %v867 = vrot.slane %v460, 6
  %v868 = vrot.slane %v461, 6
  %v869 = vsel %vm866, %v867, %v868
  %v870 = vrot.slane %v462, 6
  %v871 = vsel %vm866, %v868, %v870
  %v872 = vrot.slane %v463, 6
  %v873 = vsel %vm866, %v870, %v872
  %v874 = vrot.slane %v464, 6
  %v875 = vsel %vm866, %v872, %v874
  %v876 = vrot.slane %v465, 6
  %v877 = vsel %vm866, %v874, %v876
  %v878 = vrot.slane %v466, 6
  %v879 = vsel %vm866, %v876, %v878
  %v880 = vrot.slane %v467, 6
  %v881 = vsel %vm866, %v878, %v880
  %v882 = vrot.slane %v468, 6
  %v883 = vsel %vm866, %v880, %v882
  %s884 = scalar_lea.vmem %s3, 32
  %v885 = vld [vmem:[%s884] sm:$0xff]
  %v886 = vld [vmem:[%s884 + $0x8] sm:$0xff]
  %v887 = vsel %vm527, %v869, 0
  %v889 = vsel %vm527, %v871, 0
  %v891 = vsel %vm527, %v873, 0
  %v893 = vsel %vm527, %v875, 0
  %v895 = vsel %vm527, %v877, 0
  %v897 = vsel %vm527, %v879, 0
  %v899 = vsel %vm527, %v881, 0
  %v901 = vsel %vm527, %v883, 0
  %903 = vmatprep.subr.mxu0 0.0
  %904 = vmatpush1.msra.mxu0 0.0
  %905 = vmatprep.subr.mxu0 0.0
  %906 = vmatpush1.msra.mxu0 0.0
  %907 = vmatprep.subr.mxu0 0.0
  %908 = vmatpush1.msra.mxu0 0.0
  %909 = vmatprep.subr.mxu0 0.0
  %910 = vmatpush1.msra.mxu0 0.0
  %911 = vmatprep.subr.mxu0 0.0
  %912 = vmatpush1.msra.mxu0 0.0
  %913 = vmatprep.subr.mxu0 0.0
  %914 = vmatpush1.msra.mxu0 0.0
  %915 = vmatprep.subr.mxu0 0.0
  %916 = vmatpush1.msra.mxu0 0.0
  %917 = vmatprep.subr.mxu0 0.0
  %918 = vmatpush1.msra.mxu0 0.0
  %919 = vmatprep.subr.mxu0 0.0
  %920 = vmatpush1.msra.mxu0 0.0
  %921 = vmatprep.subr.mxu0 0.0
  %922 = vmatpush1.msra.mxu0 0.0
  %923 = vmatprep.subr.mxu0 0.0
  %924 = vmatpush1.msra.mxu0 0.0
  %925 = vmatprep.subr.mxu0 0.0
  %926 = vmatpush1.msra.mxu0 0.0
  %927 = vmatprep.subr.mxu0 0.0
  %928 = vmatpush1.msra.mxu0 0.0
  %929 = vmatprep.subr.mxu0 0.0
  %930 = vmatpush1.msra.mxu0 0.0
  %931 = vmatprep.subr.mxu0 0.0
  %932 = vmatpush1.msra.mxu0 %v886
  %933 = vmatprep.subr.mxu0 0.0
  %934 = vmatpush1.msra.mxu0 %v885
  %935 = vmatprep.subr.mxu0 0.0
  %936 = vmatpush2.msra.mxu0 0.0
  %937 = vmatprep.subr.mxu0 0.0
  %938 = vmatpush2.msra.mxu0 0.0
  %939 = vmatprep.subr.mxu0 0.0
  %940 = vmatpush2.msra.mxu0 0.0
  %941 = vmatprep.subr.mxu0 0.0
  %942 = vmatpush2.msra.mxu0 0.0
  %943 = vmatprep.subr.mxu0 0.0
  %944 = vmatpush2.msra.mxu0 0.0
  %945 = vmatprep.subr.mxu0 0.0
  %946 = vmatpush2.msra.mxu0 0.0
  %947 = vmatprep.subr.mxu0 0.0
  %948 = vmatpush2.msra.mxu0 0.0
  %949 = vmatprep.subr.mxu0 0.0
  %950 = vmatpush2.msra.mxu0 0.0
  %951 = vmatprep.subr.mxu0 0.0
  %952 = vmatpush2.msra.mxu0 0.0
  %953 = vmatprep.subr.mxu0 0.0
  %954 = vmatpush2.msra.mxu0 0.0
  %955 = vmatprep.subr.mxu0 0.0
  %956 = vmatpush2.msra.mxu0 0.0
  %957 = vmatprep.subr.mxu0 0.0
  %958 = vmatpush2.msra.mxu0 0.0
  %959 = vmatprep.subr.mxu0 0.0
  %960 = vmatpush2.msra.mxu0 0.0
  %961 = vmatprep.subr.mxu0 0.0
  %962 = vmatpush2.msra.mxu0 0.0
  %963 = vmatprep.subr.mxu0 0.0
  %964 = vmatpush2.msra.mxu0 0.0
  %965 = vmatprep.subr.mxu0 0.0
  %966 = vmatpush2.msra.mxu0 0.0
  %967 = vmatprep.mubr.f32.mxu0 0.0
  %968 = vmatmul.mubr.f32.gmra.mxu0 %v544
  %v969 = vpop.f32.mrf.mxu0
  %v970 = vadd.f32 0.0, %v969
  %v971 = vpop.f32.mrf.mxu0
  %972 = vmatprep.mubr.f32.mxu0 0.0
  %973 = vmatmul.mubr.f32.gmra.mxu0 %v546
  %v974 = vpop.f32.mrf.mxu0
  %v975 = vadd.f32 0.0, %v974
  %v976 = vpop.f32.mrf.mxu0
  %977 = vmatprep.mubr.f32.mxu0 0.0
  %978 = vmatmul.mubr.f32.gmra.mxu0 %v548
  %v979 = vpop.f32.mrf.mxu0
  %v980 = vadd.f32 0.0, %v979
  %v981 = vpop.f32.mrf.mxu0
  %982 = vmatprep.mubr.f32.mxu0 0.0
  %983 = vmatmul.mubr.f32.gmra.mxu0 %v550
  %v984 = vpop.f32.mrf.mxu0
  %v985 = vadd.f32 0.0, %v984
  %v986 = vpop.f32.mrf.mxu0
  %987 = vmatprep.mubr.f32.mxu0 0.0
  %988 = vmatmul.mubr.f32.gmra.mxu0 %v552
  %v989 = vpop.f32.mrf.mxu0
  %v990 = vadd.f32 0.0, %v989
  %v991 = vpop.f32.mrf.mxu0
  %992 = vmatprep.mubr.f32.mxu0 0.0
  %993 = vmatmul.mubr.f32.gmra.mxu0 %v554
  %v994 = vpop.f32.mrf.mxu0
  %v995 = vadd.f32 0.0, %v994
  %v996 = vpop.f32.mrf.mxu0
  %997 = vmatprep.mubr.f32.mxu0 0.0
  %998 = vmatmul.mubr.f32.gmra.mxu0 %v556
  %v999 = vpop.f32.mrf.mxu0
  %v1000 = vadd.f32 0.0, %v999
  %v1001 = vpop.f32.mrf.mxu0
  %1002 = vmatprep.mubr.f32.mxu0 0.0
  %1003 = vmatmul.mubr.f32.gmra.mxu0 %v558
  %v1004 = vpop.f32.mrf.mxu0
  %v1005 = vadd.f32 0.0, %v1004
  %v1006 = vpop.f32.mrf.mxu0
  %1007 = vmatprep.mubr.f32.mxu0 0.0
  %1008 = vmatmul.mubr.f32.gmra.mxu0 %v887
  %v1009 = vpop.f32.mrf.mxu0
  %v1010 = vadd.f32 0.0, %v1009
  %v1011 = vpop.f32.mrf.mxu0
  %1012 = vmatprep.mubr.f32.mxu0 0.0
  %1013 = vmatmul.mubr.f32.gmra.mxu0 %v889
  %v1014 = vpop.f32.mrf.mxu0
  %v1015 = vadd.f32 0.0, %v1014
  %v1016 = vpop.f32.mrf.mxu0
  %1017 = vmatprep.mubr.f32.mxu0 0.0
  %1018 = vmatmul.mubr.f32.gmra.mxu0 %v891
  %v1019 = vpop.f32.mrf.mxu0
  %v1020 = vadd.f32 0.0, %v1019
  %v1021 = vpop.f32.mrf.mxu0
  %1022 = vmatprep.mubr.f32.mxu0 0.0
  %1023 = vmatmul.mubr.f32.gmra.mxu0 %v893
  %v1024 = vpop.f32.mrf.mxu0
  %v1025 = vadd.f32 0.0, %v1024
  %v1026 = vpop.f32.mrf.mxu0
  %1027 = vmatprep.mubr.f32.mxu0 0.0
  %1028 = vmatmul.mubr.f32.gmra.mxu0 %v895
  %v1029 = vpop.f32.mrf.mxu0
  %v1030 = vadd.f32 0.0, %v1029
  %v1031 = vpop.f32.mrf.mxu0
  %1032 = vmatprep.mubr.f32.mxu0 0.0
  %1033 = vmatmul.mubr.f32.gmra.mxu0 %v897
  %v1034 = vpop.f32.mrf.mxu0
  %v1035 = vadd.f32 0.0, %v1034
  %v1036 = vpop.f32.mrf.mxu0
  %1037 = vmatprep.mubr.f32.mxu0 0.0
  %1038 = vmatmul.mubr.f32.gmra.mxu0 %v899
  %v1039 = vpop.f32.mrf.mxu0
  %v1040 = vadd.f32 0.0, %v1039
  %v1041 = vpop.f32.mrf.mxu0
  %1042 = vmatprep.mubr.f32.mxu0 0.0
  %1043 = vmatmul.mubr.f32.gmra.mxu0 %v901
  %v1044 = vpop.f32.mrf.mxu0
  %v1045 = vadd.f32 0.0, %v1044
  %v1046 = vpop.f32.mrf.mxu0
  %1047 = vdwg.mxu0
  %v1048 = vadd.f32 %v788, %v970
  %v1049 = vadd.f32 %v793, %v975
  %v1050 = vadd.f32 %v798, %v980
  %v1051 = vadd.f32 %v803, %v985
  %v1052 = vadd.f32 %v808, %v990
  %v1053 = vadd.f32 %v813, %v995
  %v1054 = vadd.f32 %v818, %v1000
  %v1055 = vadd.f32 %v823, %v1005
  %v1056 = vadd.f32 %v828, %v1010
  %v1057 = vadd.f32 %v833, %v1015
  %v1058 = vadd.f32 %v838, %v1020
  %v1059 = vadd.f32 %v843, %v1025
  %v1060 = vadd.f32 %v848, %v1030
  %v1061 = vadd.f32 %v853, %v1035
  %v1062 = vadd.f32 %v858, %v1040
  %v1063 = vadd.f32 %v863, %v1045
  %v1064 = vrot.slane %v452, 4
  %v1065 = vrot.slane %v453, 4
  %v1066 = vsel %vm478, %v1064, %v1065
  %v1067 = vrot.slane %v454, 4
  %v1068 = vsel %vm478, %v1065, %v1067
  %v1069 = vrot.slane %v455, 4
  %v1070 = vsel %vm478, %v1067, %v1069
  %v1071 = vrot.slane %v456, 4
  %v1072 = vsel %vm478, %v1069, %v1071
  %v1073 = vrot.slane %v457, 4
  %v1074 = vsel %vm478, %v1071, %v1073
  %v1075 = vrot.slane %v458, 4
  %v1076 = vsel %vm478, %v1073, %v1075
  %v1077 = vrot.slane %v459, 4
  %v1078 = vsel %vm478, %v1075, %v1077
  %v1079 = vsel %vm478, %v1077, %v479
  %s1080 = scalar_lea.vmem %s3, 48
  %v1081 = vld [vmem:[%s1080] sm:$0xff]
  %v1082 = vld [vmem:[%s1080 + $0x8] sm:$0xff]
  %v1083 = vsel %vm527, %v1066, 0
  %v1085 = vsel %vm527, %v1068, 0
  %v1087 = vsel %vm527, %v1070, 0
  %v1089 = vsel %vm527, %v1072, 0
  %v1091 = vsel %vm527, %v1074, 0
  %v1093 = vsel %vm527, %v1076, 0
  %v1095 = vsel %vm527, %v1078, 0
  %v1097 = vsel %vm527, %v1079, 0
  %1099 = vmatprep.subr.mxu0 0.0
  %1100 = vmatpush1.msra.mxu0 0.0
  %1101 = vmatprep.subr.mxu0 0.0
  %1102 = vmatpush1.msra.mxu0 0.0
  %1103 = vmatprep.subr.mxu0 0.0
  %1104 = vmatpush1.msra.mxu0 0.0
  %1105 = vmatprep.subr.mxu0 0.0
  %1106 = vmatpush1.msra.mxu0 0.0
  %1107 = vmatprep.subr.mxu0 0.0
  %1108 = vmatpush1.msra.mxu0 0.0
  %1109 = vmatprep.subr.mxu0 0.0
  %1110 = vmatpush1.msra.mxu0 0.0
  %1111 = vmatprep.subr.mxu0 0.0
  %1112 = vmatpush1.msra.mxu0 0.0
  %1113 = vmatprep.subr.mxu0 0.0
  %1114 = vmatpush1.msra.mxu0 0.0
  %1115 = vmatprep.subr.mxu0 0.0
  %1116 = vmatpush1.msra.mxu0 0.0
  %1117 = vmatprep.subr.mxu0 0.0
  %1118 = vmatpush1.msra.mxu0 0.0
  %1119 = vmatprep.subr.mxu0 0.0
  %1120 = vmatpush1.msra.mxu0 0.0
  %1121 = vmatprep.subr.mxu0 0.0
  %1122 = vmatpush1.msra.mxu0 0.0
  %1123 = vmatprep.subr.mxu0 0.0
  %1124 = vmatpush1.msra.mxu0 0.0
  %1125 = vmatprep.subr.mxu0 0.0
  %1126 = vmatpush1.msra.mxu0 0.0
  %1127 = vmatprep.subr.mxu0 0.0
  %1128 = vmatpush1.msra.mxu0 %v1082
  %1129 = vmatprep.subr.mxu0 0.0
  %1130 = vmatpush1.msra.mxu0 %v1081
  %1131 = vmatprep.subr.mxu0 0.0
  %1132 = vmatpush2.msra.mxu0 0.0
  %1133 = vmatprep.subr.mxu0 0.0
  %1134 = vmatpush2.msra.mxu0 0.0
  %1135 = vmatprep.subr.mxu0 0.0
  %1136 = vmatpush2.msra.mxu0 0.0
  %1137 = vmatprep.subr.mxu0 0.0
  %1138 = vmatpush2.msra.mxu0 0.0
  %1139 = vmatprep.subr.mxu0 0.0
  %1140 = vmatpush2.msra.mxu0 0.0
  %1141 = vmatprep.subr.mxu0 0.0
  %1142 = vmatpush2.msra.mxu0 0.0
  %1143 = vmatprep.subr.mxu0 0.0
  %1144 = vmatpush2.msra.mxu0 0.0
  %1145 = vmatprep.subr.mxu0 0.0
  %1146 = vmatpush2.msra.mxu0 0.0
  %1147 = vmatprep.subr.mxu0 0.0
  %1148 = vmatpush2.msra.mxu0 0.0
  %1149 = vmatprep.subr.mxu0 0.0
  %1150 = vmatpush2.msra.mxu0 0.0
  %1151 = vmatprep.subr.mxu0 0.0
  %1152 = vmatpush2.msra.mxu0 0.0
  %1153 = vmatprep.subr.mxu0 0.0
  %1154 = vmatpush2.msra.mxu0 0.0
  %1155 = vmatprep.subr.mxu0 0.0
  %1156 = vmatpush2.msra.mxu0 0.0
  %1157 = vmatprep.subr.mxu0 0.0
  %1158 = vmatpush2.msra.mxu0 0.0
  %1159 = vmatprep.subr.mxu0 0.0
  %1160 = vmatpush2.msra.mxu0 0.0
  %1161 = vmatprep.subr.mxu0 0.0
  %1162 = vmatpush2.msra.mxu0 0.0
  %1163 = vmatprep.mubr.f32.mxu0 0.0
  %1164 = vmatmul.mubr.f32.gmra.mxu0 %v887
  %v1165 = vpop.f32.mrf.mxu0
  %v1166 = vadd.f32 0.0, %v1165
  %v1167 = vpop.f32.mrf.mxu0
  %1168 = vmatprep.mubr.f32.mxu0 0.0
  %1169 = vmatmul.mubr.f32.gmra.mxu0 %v889
  %v1170 = vpop.f32.mrf.mxu0
  %v1171 = vadd.f32 0.0, %v1170
  %v1172 = vpop.f32.mrf.mxu0
  %1173 = vmatprep.mubr.f32.mxu0 0.0
  %1174 = vmatmul.mubr.f32.gmra.mxu0 %v891
  %v1175 = vpop.f32.mrf.mxu0
  %v1176 = vadd.f32 0.0, %v1175
  %v1177 = vpop.f32.mrf.mxu0
  %1178 = vmatprep.mubr.f32.mxu0 0.0
  %1179 = vmatmul.mubr.f32.gmra.mxu0 %v893
  %v1180 = vpop.f32.mrf.mxu0
  %v1181 = vadd.f32 0.0, %v1180
  %v1182 = vpop.f32.mrf.mxu0
  %1183 = vmatprep.mubr.f32.mxu0 0.0
  %1184 = vmatmul.mubr.f32.gmra.mxu0 %v895
  %v1185 = vpop.f32.mrf.mxu0
  %v1186 = vadd.f32 0.0, %v1185
  %v1187 = vpop.f32.mrf.mxu0
  %1188 = vmatprep.mubr.f32.mxu0 0.0
  %1189 = vmatmul.mubr.f32.gmra.mxu0 %v897
  %v1190 = vpop.f32.mrf.mxu0
  %v1191 = vadd.f32 0.0, %v1190
  %v1192 = vpop.f32.mrf.mxu0
  %1193 = vmatprep.mubr.f32.mxu0 0.0
  %1194 = vmatmul.mubr.f32.gmra.mxu0 %v899
  %v1195 = vpop.f32.mrf.mxu0
  %v1196 = vadd.f32 0.0, %v1195
  %v1197 = vpop.f32.mrf.mxu0
  %1198 = vmatprep.mubr.f32.mxu0 0.0
  %1199 = vmatmul.mubr.f32.gmra.mxu0 %v901
  %v1200 = vpop.f32.mrf.mxu0
  %v1201 = vadd.f32 0.0, %v1200
  %v1202 = vpop.f32.mrf.mxu0
  %1203 = vmatprep.mubr.f32.mxu0 0.0
  %1204 = vmatmul.mubr.f32.gmra.mxu0 %v1083
  %v1205 = vpop.f32.mrf.mxu0
  %v1206 = vadd.f32 0.0, %v1205
  %v1207 = vpop.f32.mrf.mxu0
  %1208 = vmatprep.mubr.f32.mxu0 0.0
  %1209 = vmatmul.mubr.f32.gmra.mxu0 %v1085
  %v1210 = vpop.f32.mrf.mxu0
  %v1211 = vadd.f32 0.0, %v1210
  %v1212 = vpop.f32.mrf.mxu0
  %1213 = vmatprep.mubr.f32.mxu0 0.0
  %1214 = vmatmul.mubr.f32.gmra.mxu0 %v1087
  %v1215 = vpop.f32.mrf.mxu0
  %v1216 = vadd.f32 0.0, %v1215
  %v1217 = vpop.f32.mrf.mxu0
  %1218 = vmatprep.mubr.f32.mxu0 0.0
  %1219 = vmatmul.mubr.f32.gmra.mxu0 %v1089
  %v1220 = vpop.f32.mrf.mxu0
  %v1221 = vadd.f32 0.0, %v1220
  %v1222 = vpop.f32.mrf.mxu0
  %1223 = vmatprep.mubr.f32.mxu0 0.0
  %1224 = vmatmul.mubr.f32.gmra.mxu0 %v1091
  %v1225 = vpop.f32.mrf.mxu0
  %v1226 = vadd.f32 0.0, %v1225
  %v1227 = vpop.f32.mrf.mxu0
  %1228 = vmatprep.mubr.f32.mxu0 0.0
  %1229 = vmatmul.mubr.f32.gmra.mxu0 %v1093
  %v1230 = vpop.f32.mrf.mxu0
  %v1231 = vadd.f32 0.0, %v1230
  %v1232 = vpop.f32.mrf.mxu0
  %1233 = vmatprep.mubr.f32.mxu0 0.0
  %1234 = vmatmul.mubr.f32.gmra.mxu0 %v1095
  %v1235 = vpop.f32.mrf.mxu0
  %v1236 = vadd.f32 0.0, %v1235
  %v1237 = vpop.f32.mrf.mxu0
  %1238 = vmatprep.mubr.f32.mxu0 0.0
  %1239 = vmatmul.mubr.f32.gmra.mxu0 %v1097
  %v1240 = vpop.f32.mrf.mxu0
  %v1241 = vadd.f32 0.0, %v1240
  %v1242 = vpop.f32.mrf.mxu0
  %1243 = vdwg.mxu0
  %v1244 = vadd.f32 %v1048, %v1166
  %v1245 = vadd.f32 %v1049, %v1171
  %v1246 = vadd.f32 %v1050, %v1176
  %v1247 = vadd.f32 %v1051, %v1181
  %v1248 = vadd.f32 %v1052, %v1186
  %v1249 = vadd.f32 %v1053, %v1191
  %v1250 = vadd.f32 %v1054, %v1196
  %v1251 = vadd.f32 %v1055, %v1201
  %v1252 = vadd.f32 %v1056, %v1206
  %v1253 = vadd.f32 %v1057, %v1211
  %v1254 = vadd.f32 %v1058, %v1216
  %v1255 = vadd.f32 %v1059, %v1221
  %v1256 = vadd.f32 %v1060, %v1226
  %v1257 = vadd.f32 %v1061, %v1231
  %v1258 = vadd.f32 %v1062, %v1236
  %v1259 = vadd.f32 %v1063, %v1241
  %s1260 = scalar_lea.vmem %s3, 64
  %v1261 = vld [vmem:[%s1260] sm:$0xff]
  %v1262 = vld [vmem:[%s1260 + $0x8] sm:$0xff]
  %v1263 = vsel %vm527, %v461, 0
  %v1265 = vsel %vm527, %v462, 0
  %v1267 = vsel %vm527, %v463, 0
  %v1269 = vsel %vm527, %v464, 0
  %v1271 = vsel %vm527, %v465, 0
  %v1273 = vsel %vm527, %v466, 0
  %v1275 = vsel %vm527, %v467, 0
  %v1277 = vsel %vm527, %v468, 0
  %1279 = vmatprep.subr.mxu0 0.0
  %1280 = vmatpush1.msra.mxu0 0.0
  %1281 = vmatprep.subr.mxu0 0.0
  %1282 = vmatpush1.msra.mxu0 0.0
  %1283 = vmatprep.subr.mxu0 0.0
  %1284 = vmatpush1.msra.mxu0 0.0
  %1285 = vmatprep.subr.mxu0 0.0
  %1286 = vmatpush1.msra.mxu0 0.0
  %1287 = vmatprep.subr.mxu0 0.0
  %1288 = vmatpush1.msra.mxu0 0.0
  %1289 = vmatprep.subr.mxu0 0.0
  %1290 = vmatpush1.msra.mxu0 0.0
  %1291 = vmatprep.subr.mxu0 0.0
  %1292 = vmatpush1.msra.mxu0 0.0
  %1293 = vmatprep.subr.mxu0 0.0
  %1294 = vmatpush1.msra.mxu0 0.0
  %1295 = vmatprep.subr.mxu0 0.0
  %1296 = vmatpush1.msra.mxu0 0.0
  %1297 = vmatprep.subr.mxu0 0.0
  %1298 = vmatpush1.msra.mxu0 0.0
  %1299 = vmatprep.subr.mxu0 0.0
  %1300 = vmatpush1.msra.mxu0 0.0
  %1301 = vmatprep.subr.mxu0 0.0
  %1302 = vmatpush1.msra.mxu0 0.0
  %1303 = vmatprep.subr.mxu0 0.0
  %1304 = vmatpush1.msra.mxu0 0.0
  %1305 = vmatprep.subr.mxu0 0.0
  %1306 = vmatpush1.msra.mxu0 0.0
  %1307 = vmatprep.subr.mxu0 0.0
  %1308 = vmatpush1.msra.mxu0 %v1262
  %1309 = vmatprep.subr.mxu0 0.0
  %1310 = vmatpush1.msra.mxu0 %v1261
  %1311 = vmatprep.subr.mxu0 0.0
  %1312 = vmatpush2.msra.mxu0 0.0
  %1313 = vmatprep.subr.mxu0 0.0
  %1314 = vmatpush2.msra.mxu0 0.0
  %1315 = vmatprep.subr.mxu0 0.0
  %1316 = vmatpush2.msra.mxu0 0.0
  %1317 = vmatprep.subr.mxu0 0.0
  %1318 = vmatpush2.msra.mxu0 0.0
  %1319 = vmatprep.subr.mxu0 0.0
  %1320 = vmatpush2.msra.mxu0 0.0
  %1321 = vmatprep.subr.mxu0 0.0
  %1322 = vmatpush2.msra.mxu0 0.0
  %1323 = vmatprep.subr.mxu0 0.0
  %1324 = vmatpush2.msra.mxu0 0.0
  %1325 = vmatprep.subr.mxu0 0.0
  %1326 = vmatpush2.msra.mxu0 0.0
  %1327 = vmatprep.subr.mxu0 0.0
  %1328 = vmatpush2.msra.mxu0 0.0
  %1329 = vmatprep.subr.mxu0 0.0
  %1330 = vmatpush2.msra.mxu0 0.0
  %1331 = vmatprep.subr.mxu0 0.0
  %1332 = vmatpush2.msra.mxu0 0.0
  %1333 = vmatprep.subr.mxu0 0.0
  %1334 = vmatpush2.msra.mxu0 0.0
  %1335 = vmatprep.subr.mxu0 0.0
  %1336 = vmatpush2.msra.mxu0 0.0
  %1337 = vmatprep.subr.mxu0 0.0
  %1338 = vmatpush2.msra.mxu0 0.0
  %1339 = vmatprep.subr.mxu0 0.0
  %1340 = vmatpush2.msra.mxu0 0.0
  %1341 = vmatprep.subr.mxu0 0.0
  %1342 = vmatpush2.msra.mxu0 0.0
  %1343 = vmatprep.mubr.f32.mxu0 0.0
  %1344 = vmatmul.mubr.f32.gmra.mxu0 %v1083
  %v1345 = vpop.f32.mrf.mxu0
  %v1346 = vadd.f32 0.0, %v1345
  %v1347 = vpop.f32.mrf.mxu0
  %1348 = vmatprep.mubr.f32.mxu0 0.0
  %1349 = vmatmul.mubr.f32.gmra.mxu0 %v1085
  %v1350 = vpop.f32.mrf.mxu0
  %v1351 = vadd.f32 0.0, %v1350
  %v1352 = vpop.f32.mrf.mxu0
  %1353 = vmatprep.mubr.f32.mxu0 0.0
  %1354 = vmatmul.mubr.f32.gmra.mxu0 %v1087
  %v1355 = vpop.f32.mrf.mxu0
  %v1356 = vadd.f32 0.0, %v1355
  %v1357 = vpop.f32.mrf.mxu0
  %1358 = vmatprep.mubr.f32.mxu0 0.0
  %1359 = vmatmul.mubr.f32.gmra.mxu0 %v1089
  %v1360 = vpop.f32.mrf.mxu0
  %v1361 = vadd.f32 0.0, %v1360
  %v1362 = vpop.f32.mrf.mxu0
  %1363 = vmatprep.mubr.f32.mxu0 0.0
  %1364 = vmatmul.mubr.f32.gmra.mxu0 %v1091
  %v1365 = vpop.f32.mrf.mxu0
  %v1366 = vadd.f32 0.0, %v1365
  %v1367 = vpop.f32.mrf.mxu0
  %1368 = vmatprep.mubr.f32.mxu0 0.0
  %1369 = vmatmul.mubr.f32.gmra.mxu0 %v1093
  %v1370 = vpop.f32.mrf.mxu0
  %v1371 = vadd.f32 0.0, %v1370
  %v1372 = vpop.f32.mrf.mxu0
  %1373 = vmatprep.mubr.f32.mxu0 0.0
  %1374 = vmatmul.mubr.f32.gmra.mxu0 %v1095
  %v1375 = vpop.f32.mrf.mxu0
  %v1376 = vadd.f32 0.0, %v1375
  %v1377 = vpop.f32.mrf.mxu0
  %1378 = vmatprep.mubr.f32.mxu0 0.0
  %1379 = vmatmul.mubr.f32.gmra.mxu0 %v1097
  %v1380 = vpop.f32.mrf.mxu0
  %v1381 = vadd.f32 0.0, %v1380
  %v1382 = vpop.f32.mrf.mxu0
  %1383 = vmatprep.mubr.f32.mxu0 0.0
  %1384 = vmatmul.mubr.f32.gmra.mxu0 %v1263
  %v1385 = vpop.f32.mrf.mxu0
  %v1386 = vadd.f32 0.0, %v1385
  %v1387 = vpop.f32.mrf.mxu0
  %1388 = vmatprep.mubr.f32.mxu0 0.0
  %1389 = vmatmul.mubr.f32.gmra.mxu0 %v1265
  %v1390 = vpop.f32.mrf.mxu0
  %v1391 = vadd.f32 0.0, %v1390
  %v1392 = vpop.f32.mrf.mxu0
  %1393 = vmatprep.mubr.f32.mxu0 0.0
  %1394 = vmatmul.mubr.f32.gmra.mxu0 %v1267
  %v1395 = vpop.f32.mrf.mxu0
  %v1396 = vadd.f32 0.0, %v1395
  %v1397 = vpop.f32.mrf.mxu0
  %1398 = vmatprep.mubr.f32.mxu0 0.0
  %1399 = vmatmul.mubr.f32.gmra.mxu0 %v1269
  %v1400 = vpop.f32.mrf.mxu0
  %v1401 = vadd.f32 0.0, %v1400
  %v1402 = vpop.f32.mrf.mxu0
  %1403 = vmatprep.mubr.f32.mxu0 0.0
  %1404 = vmatmul.mubr.f32.gmra.mxu0 %v1271
  %v1405 = vpop.f32.mrf.mxu0
  %v1406 = vadd.f32 0.0, %v1405
  %v1407 = vpop.f32.mrf.mxu0
  %1408 = vmatprep.mubr.f32.mxu0 0.0
  %1409 = vmatmul.mubr.f32.gmra.mxu0 %v1273
  %v1410 = vpop.f32.mrf.mxu0
  %v1411 = vadd.f32 0.0, %v1410
  %v1412 = vpop.f32.mrf.mxu0
  %1413 = vmatprep.mubr.f32.mxu0 0.0
  %1414 = vmatmul.mubr.f32.gmra.mxu0 %v1275
  %v1415 = vpop.f32.mrf.mxu0
  %v1416 = vadd.f32 0.0, %v1415
  %v1417 = vpop.f32.mrf.mxu0
  %1418 = vmatprep.mubr.f32.mxu0 0.0
  %1419 = vmatmul.mubr.f32.gmra.mxu0 %v1277
  %v1420 = vpop.f32.mrf.mxu0
  %v1421 = vadd.f32 0.0, %v1420
  %v1422 = vpop.f32.mrf.mxu0
  %1423 = vdwg.mxu0
  %v1424 = vadd.f32 %v1244, %v1346
  %v1425 = vadd.f32 %v1245, %v1351
  %v1426 = vadd.f32 %v1246, %v1356
  %v1427 = vadd.f32 %v1247, %v1361
  %v1428 = vadd.f32 %v1248, %v1366
  %v1429 = vadd.f32 %v1249, %v1371
  %v1430 = vadd.f32 %v1250, %v1376
  %v1431 = vadd.f32 %v1251, %v1381
  %v1432 = vadd.f32 %v1252, %v1386
  %v1433 = vadd.f32 %v1253, %v1391
  %v1434 = vadd.f32 %v1254, %v1396
  %v1435 = vadd.f32 %v1255, %v1401
  %v1436 = vadd.f32 %v1256, %v1406
  %v1437 = vadd.f32 %v1257, %v1411
  %v1438 = vadd.f32 %v1258, %v1416
  %v1439 = vadd.f32 %v1259, %v1421
  %v1440 = vld [vmem:[%s4] sm:$0x1]
  %v1442 = vlaneseq
  %v1443 = vshrl.u32 %v1442, 7
  %v1444 = vsub.s32 0, %v1443
  %v1445 = vrot.slane %v1440, %v1444
  %v1447 = vadd.f32 %v1424, %v1445
  %v1448 = vadd.f32 %v1425, %v1445
  %v1449 = vadd.f32 %v1426, %v1445
  %v1450 = vadd.f32 %v1427, %v1445
  %v1451 = vadd.f32 %v1428, %v1445
  %v1452 = vadd.f32 %v1429, %v1445
  %v1453 = vadd.f32 %v1430, %v1445
  %v1454 = vadd.f32 %v1431, %v1445
  %v1455 = vadd.f32 %v1432, %v1445
  %v1456 = vadd.f32 %v1433, %v1445
  %v1457 = vadd.f32 %v1434, %v1445
  %v1458 = vadd.f32 %v1435, %v1445
  %v1459 = vadd.f32 %v1436, %v1445
  %v1460 = vadd.f32 %v1437, %v1445
  %v1461 = vadd.f32 %v1438, %v1445
  %v1462 = vadd.f32 %v1439, %v1445
  %v1463 = vmax.f32 %v1447, 0.0
  %v1464 = vmax.f32 %v1448, 0.0
  %v1465 = vmax.f32 %v1449, 0.0
  %v1466 = vmax.f32 %v1450, 0.0
  %v1467 = vmax.f32 %v1451, 0.0
  %v1468 = vmax.f32 %v1452, 0.0
  %v1469 = vmax.f32 %v1453, 0.0
  %v1470 = vmax.f32 %v1454, 0.0
  %v1471 = vmax.f32 %v1455, 0.0
  %v1472 = vmax.f32 %v1456, 0.0
  %v1473 = vmax.f32 %v1457, 0.0
  %v1474 = vmax.f32 %v1458, 0.0
  %v1475 = vmax.f32 %v1459, 0.0
  %v1476 = vmax.f32 %v1460, 0.0
  %v1477 = vmax.f32 %v1461, 0.0
  %v1478 = vmax.f32 %v1462, 0.0
  %v1479 = vmax.f32 %v1463, %v1471
  %v1480 = vmax.f32 %v1464, %v1472
  %v1481 = vmax.f32 %v1465, %v1473
  %v1482 = vmax.f32 %v1466, %v1474
  %v1483 = vmax.f32 %v1467, %v1475
  %v1484 = vmax.f32 %v1468, %v1476
  %v1485 = vmax.f32 %v1469, %v1477
  %v1486 = vmax.f32 %v1470, %v1478
  %vm1487 = vcmask 254976
  %1488 = vst.msk [vmem:[#allocation2] sm:$0x3] %vm1487, %v1479
  %v1491 = vunpack.c.l.s4 1983009808
  %v1492 = vunpack.c.0.s8 %v1491
  %v1493 = vlaneseq
  %v1494 = vshrl.u32 %v1493, 7
  %v1495 = vsub.s32 %v1492, %v1494
  %v1496 = vrot.slane %v1479, %v1495
  %v1497 = vcombine.high %v1496, %v1496
  %1498 = vrot.lane.b32.xlu0 %v1497, 32
  %v1499 = vpop.permute.xlu0 %1498
  %vm1501 = vcmask 517376
  %1502 = vst.msk [vmem:[#allocation2] sm:$0x3] %vm1501, %v1499
  %v1503 = vcombine.high %v1479, %v1479
  %v1505 = vunpack.c.l.s4 1983009808
  %v1506 = vunpack.c.0.s8 %v1505
  %v1507 = vlaneseq
  %v1508 = vshrl.u32 %v1507, 7
  %v1509 = vsub.s32 %v1506, %v1508
  %v1510 = vrot.slane %v1503, %v1509
  %1511 = vrot.lane.b32.xlu0 %v1510, 64
  %v1512 = vpop.permute.xlu0 %1511
  %vm1514 = vcmask 779776
  %1515 = vst.msk [vmem:[#allocation2] sm:$0x3] %vm1514, %v1512
  %v1516 = vcombine.high %v1510, %v1510
  %1517 = vrot.lane.b32.xlu0 %v1516, 96
  %v1518 = vpop.permute.xlu0 %1517
  %vm1520 = vcmask 1042176
  %1521 = vst.msk [vmem:[#allocation2] sm:$0x3] %vm1520, %v1518
  %1522 = vst.msk [vmem:[#allocation2 + $0x2] sm:$0x3] %vm1487, %v1480
  %v1525 = vunpack.c.l.s4 1983009808
  %v1526 = vunpack.c.0.s8 %v1525
  %v1527 = vlaneseq
  %v1528 = vshrl.u32 %v1527, 7
  %v1529 = vsub.s32 %v1526, %v1528
  %v1530 = vrot.slane %v1480, %v1529
  %v1531 = vcombine.high %v1530, %v1530
  %1532 = vrot.lane.b32.xlu0 %v1531, 32
  %v1533 = vpop.permute.xlu0 %1532
  %1535 = vst.msk [vmem:[#allocation2 + $0x2] sm:$0x3] %vm1501, %v1533
  %v1536 = vcombine.high %v1480, %v1480
  %v1538 = vunpack.c.l.s4 1983009808
  %v1539 = vunpack.c.0.s8 %v1538
  %v1540 = vlaneseq
  %v1541 = vshrl.u32 %v1540, 7
  %v1542 = vsub.s32 %v1539, %v1541
  %v1543 = vrot.slane %v1536, %v1542
  %1544 = vrot.lane.b32.xlu0 %v1543, 64
  %v1545 = vpop.permute.xlu0 %1544
  %1547 = vst.msk [vmem:[#allocation2 + $0x2] sm:$0x3] %vm1514, %v1545
  %v1548 = vcombine.high %v1543, %v1543
  %1549 = vrot.lane.b32.xlu0 %v1548, 96
  %v1550 = vpop.permute.xlu0 %1549
  %1552 = vst.msk [vmem:[#allocation2 + $0x2] sm:$0x3] %vm1520, %v1550
  %1553 = vst.msk [vmem:[#allocation2 + $0x4] sm:$0x3] %vm1487, %v1481
  %v1556 = vunpack.c.l.s4 1983009808
  %v1557 = vunpack.c.0.s8 %v1556
  %v1558 = vlaneseq
  %v1559 = vshrl.u32 %v1558, 7
  %v1560 = vsub.s32 %v1557, %v1559
  %v1561 = vrot.slane %v1481, %v1560
  %v1562 = vcombine.high %v1561, %v1561
  %1563 = vrot.lane.b32.xlu0 %v1562, 32
  %v1564 = vpop.permute.xlu0 %1563
  %1566 = vst.msk [vmem:[#allocation2 + $0x4] sm:$0x3] %vm1501, %v1564
  %v1567 = vcombine.high %v1481, %v1481
  %v1569 = vunpack.c.l.s4 1983009808
  %v1570 = vunpack.c.0.s8 %v1569
  %v1571 = vlaneseq
  %v1572 = vshrl.u32 %v1571, 7
  %v1573 = vsub.s32 %v1570, %v1572
  %v1574 = vrot.slane %v1567, %v1573
  %1575 = vrot.lane.b32.xlu0 %v1574, 64
  %v1576 = vpop.permute.xlu0 %1575
  %1578 = vst.msk [vmem:[#allocation2 + $0x4] sm:$0x3] %vm1514, %v1576
  %v1579 = vcombine.high %v1574, %v1574
  %1580 = vrot.lane.b32.xlu0 %v1579, 96
  %v1581 = vpop.permute.xlu0 %1580
  %1583 = vst.msk [vmem:[#allocation2 + $0x4] sm:$0x3] %vm1520, %v1581
  %1584 = vst.msk [vmem:[#allocation2 + $0x6] sm:$0x3] %vm1487, %v1482
  %v1587 = vunpack.c.l.s4 1983009808
  %v1588 = vunpack.c.0.s8 %v1587
  %v1589 = vlaneseq
  %v1590 = vshrl.u32 %v1589, 7
  %v1591 = vsub.s32 %v1588, %v1590
  %v1592 = vrot.slane %v1482, %v1591
  %v1593 = vcombine.high %v1592, %v1592
  %1594 = vrot.lane.b32.xlu0 %v1593, 32
  %v1595 = vpop.permute.xlu0 %1594
  %1597 = vst.msk [vmem:[#allocation2 + $0x6] sm:$0x3] %vm1501, %v1595
  %v1598 = vcombine.high %v1482, %v1482
  %v1600 = vunpack.c.l.s4 1983009808
  %v1601 = vunpack.c.0.s8 %v1600
  %v1602 = vlaneseq
  %v1603 = vshrl.u32 %v1602, 7
  %v1604 = vsub.s32 %v1601, %v1603
  %v1605 = vrot.slane %v1598, %v1604
  %1606 = vrot.lane.b32.xlu0 %v1605, 64
  %v1607 = vpop.permute.xlu0 %1606
  %1609 = vst.msk [vmem:[#allocation2 + $0x6] sm:$0x3] %vm1514, %v1607
  %v1610 = vcombine.high %v1605, %v1605
  %1611 = vrot.lane.b32.xlu0 %v1610, 96
  %v1612 = vpop.permute.xlu0 %1611
  %1614 = vst.msk [vmem:[#allocation2 + $0x6] sm:$0x3] %vm1520, %v1612
  %1615 = vst.msk [vmem:[#allocation2 + $0x8] sm:$0x3] %vm1487, %v1483
  %v1618 = vunpack.c.l.s4 1983009808
  %v1619 = vunpack.c.0.s8 %v1618
  %v1620 = vlaneseq
  %v1621 = vshrl.u32 %v1620, 7
  %v1622 = vsub.s32 %v1619, %v1621
  %v1623 = vrot.slane %v1483, %v1622
  %v1624 = vcombine.high %v1623, %v1623
  %1625 = vrot.lane.b32.xlu0 %v1624, 32
  %v1626 = vpop.permute.xlu0 %1625
  %1628 = vst.msk [vmem:[#allocation2 + $0x8] sm:$0x3] %vm1501, %v1626
  %v1629 = vcombine.high %v1483, %v1483
  %v1631 = vunpack.c.l.s4 1983009808
  %v1632 = vunpack.c.0.s8 %v1631
  %v1633 = vlaneseq
  %v1634 = vshrl.u32 %v1633, 7
  %v1635 = vsub.s32 %v1632, %v1634
  %v1636 = vrot.slane %v1629, %v1635
  %1637 = vrot.lane.b32.xlu0 %v1636, 64
  %v1638 = vpop.permute.xlu0 %1637
  %1640 = vst.msk [vmem:[#allocation2 + $0x8] sm:$0x3] %vm1514, %v1638
  %v1641 = vcombine.high %v1636, %v1636
  %1642 = vrot.lane.b32.xlu0 %v1641, 96
  %v1643 = vpop.permute.xlu0 %1642
  %1645 = vst.msk [vmem:[#allocation2 + $0x8] sm:$0x3] %vm1520, %v1643
  %1646 = vst.msk [vmem:[#allocation2 + $0xa] sm:$0x3] %vm1487, %v1484
  %v1649 = vunpack.c.l.s4 1983009808
  %v1650 = vunpack.c.0.s8 %v1649
  %v1651 = vlaneseq
  %v1652 = vshrl.u32 %v1651, 7
  %v1653 = vsub.s32 %v1650, %v1652
  %v1654 = vrot.slane %v1484, %v1653
  %v1655 = vcombine.high %v1654, %v1654
  %1656 = vrot.lane.b32.xlu0 %v1655, 32
  %v1657 = vpop.permute.xlu0 %1656
  %1659 = vst.msk [vmem:[#allocation2 + $0xa] sm:$0x3] %vm1501, %v1657
  %v1660 = vcombine.high %v1484, %v1484
  %v1662 = vunpack.c.l.s4 1983009808
  %v1663 = vunpack.c.0.s8 %v1662
  %v1664 = vlaneseq
  %v1665 = vshrl.u32 %v1664, 7
  %v1666 = vsub.s32 %v1663, %v1665
  %v1667 = vrot.slane %v1660, %v1666
  %1668 = vrot.lane.b32.xlu0 %v1667, 64
  %v1669 = vpop.permute.xlu0 %1668
  %1671 = vst.msk [vmem:[#allocation2 + $0xa] sm:$0x3] %vm1514, %v1669
  %v1672 = vcombine.high %v1667, %v1667
  %1673 = vrot.lane.b32.xlu0 %v1672, 96
  %v1674 = vpop.permute.xlu0 %1673
  %1676 = vst.msk [vmem:[#allocation2 + $0xa] sm:$0x3] %vm1520, %v1674
  %1677 = vst.msk [vmem:[#allocation2 + $0xc] sm:$0x3] %vm1487, %v1485
  %v1680 = vunpack.c.l.s4 1983009808
  %v1681 = vunpack.c.0.s8 %v1680
  %v1682 = vlaneseq
  %v1683 = vshrl.u32 %v1682, 7
  %v1684 = vsub.s32 %v1681, %v1683
  %v1685 = vrot.slane %v1485, %v1684
  %v1686 = vcombine.high %v1685, %v1685
  %1687 = vrot.lane.b32.xlu0 %v1686, 32
  %v1688 = vpop.permute.xlu0 %1687
  %1690 = vst.msk [vmem:[#allocation2 + $0xc] sm:$0x3] %vm1501, %v1688
  %v1691 = vcombine.high %v1485, %v1485
  %v1693 = vunpack.c.l.s4 1983009808
  %v1694 = vunpack.c.0.s8 %v1693
  %v1695 = vlaneseq
  %v1696 = vshrl.u32 %v1695, 7
  %v1697 = vsub.s32 %v1694, %v1696
  %v1698 = vrot.slane %v1691, %v1697
  %1699 = vrot.lane.b32.xlu0 %v1698, 64
  %v1700 = vpop.permute.xlu0 %1699
  %1702 = vst.msk [vmem:[#allocation2 + $0xc] sm:$0x3] %vm1514, %v1700
  %v1703 = vcombine.high %v1698, %v1698
  %1704 = vrot.lane.b32.xlu0 %v1703, 96
  %v1705 = vpop.permute.xlu0 %1704
  %1707 = vst.msk [vmem:[#allocation2 + $0xc] sm:$0x3] %vm1520, %v1705
  %1708 = vst.msk [vmem:[#allocation2 + $0xe] sm:$0x3] %vm1487, %v1486
  %v1711 = vunpack.c.l.s4 1983009808
  %v1712 = vunpack.c.0.s8 %v1711
  %v1713 = vlaneseq
  %v1714 = vshrl.u32 %v1713, 7
  %v1715 = vsub.s32 %v1712, %v1714
  %v1716 = vrot.slane %v1486, %v1715
  %v1717 = vcombine.high %v1716, %v1716
  %1718 = vrot.lane.b32.xlu0 %v1717, 32
  %v1719 = vpop.permute.xlu0 %1718
  %1721 = vst.msk [vmem:[#allocation2 + $0xe] sm:$0x3] %vm1501, %v1719
  %v1722 = vcombine.high %v1486, %v1486
  %v1724 = vunpack.c.l.s4 1983009808
  %v1725 = vunpack.c.0.s8 %v1724
  %v1726 = vlaneseq
  %v1727 = vshrl.u32 %v1726, 7
  %v1728 = vsub.s32 %v1725, %v1727
  %v1729 = vrot.slane %v1722, %v1728
  %1730 = vrot.lane.b32.xlu0 %v1729, 64
  %v1731 = vpop.permute.xlu0 %1730
  %1733 = vst.msk [vmem:[#allocation2 + $0xe] sm:$0x3] %vm1514, %v1731
  %v1734 = vcombine.high %v1729, %v1729
  %1735 = vrot.lane.b32.xlu0 %v1734, 96
  %v1736 = vpop.permute.xlu0 %1735
  %1738 = vst.msk [vmem:[#allocation2 + $0xe] sm:$0x3] %vm1520, %v1736
  %v1739 = vld [vmem:[#allocation2] sm:$0xff]
  %v1740 = vld [vmem:[#allocation2 + $0x8] sm:$0xff]
  %v1741 = vld [vmem:[%s5] sm:$0xff]
  %v1742 = vld [vmem:[%s5 + $0x8] sm:$0xff]
  %v1743 = vld [vmem:[%s5 + $0x10] sm:$0xff]
  %v1744 = vld [vmem:[%s5 + $0x18] sm:$0xff]
  %v1745 = vld [vmem:[%s5 + $0x20] sm:$0xff]
  %v1746 = vld [vmem:[%s5 + $0x28] sm:$0xff]
  %v1747 = vld [vmem:[%s5 + $0x30] sm:$0xff]
  %v1748 = vld [vmem:[%s5 + $0x38] sm:$0xff]
  %v1749 = vld [vmem:[%s5 + $0x40] sm:$0xff]
  %v1750 = vld [vmem:[%s5 + $0x48] sm:$0xff]
  %v1751 = vld [vmem:[%s5 + $0x50] sm:$0xff]
  %v1752 = vld [vmem:[%s5 + $0x58] sm:$0xff]
  %v1753 = vld [vmem:[%s5 + $0x60] sm:$0xff]
  %v1754 = vld [vmem:[%s5 + $0x68] sm:$0xff]
  %v1755 = vld [vmem:[%s5 + $0x70] sm:$0xff]
  %v1756 = vld [vmem:[%s5 + $0x78] sm:$0xff]
  %v1757 = vld [vmem:[%s5 + $0x80] sm:$0xff]
  %v1758 = vld [vmem:[%s5 + $0x88] sm:$0xff]
  %v1759 = vld [vmem:[%s5 + $0x90] sm:$0xff]
  %v1760 = vld [vmem:[%s5 + $0x98] sm:$0xff]
  %v1761 = vld [vmem:[%s5 + $0xa0] sm:$0xff]
  %v1762 = vld [vmem:[%s5 + $0xa8] sm:$0xff]
  %v1763 = vld [vmem:[%s5 + $0xb0] sm:$0xff]
  %v1764 = vld [vmem:[%s5 + $0xb8] sm:$0xff]
  %v1765 = vld [vmem:[%s5 + $0xc0] sm:$0xff]
  %v1766 = vld [vmem:[%s5 + $0xc8] sm:$0xff]
  %v1767 = vld [vmem:[%s5 + $0xd0] sm:$0xff]
  %v1768 = vld [vmem:[%s5 + $0xd8] sm:$0xff]
  %v1769 = vld [vmem:[%s5 + $0xe0] sm:$0xff]
  %v1770 = vld [vmem:[%s5 + $0xe8] sm:$0xff]
  %v1771 = vld [vmem:[%s5 + $0xf0] sm:$0xff]
  %v1772 = vld [vmem:[%s5 + $0xf8] sm:$0xff]
  %v1773 = vld [vmem:[%s5 + $0x100] sm:$0xff]
  %v1774 = vld [vmem:[%s5 + $0x108] sm:$0xff]
  %v1775 = vld [vmem:[%s5 + $0x110] sm:$0xff]
  %v1776 = vld [vmem:[%s5 + $0x118] sm:$0xff]
  %v1777 = vld [vmem:[%s5 + $0x120] sm:$0xff]
  %v1778 = vld [vmem:[%s5 + $0x128] sm:$0xff]
  %v1779 = vld [vmem:[%s5 + $0x130] sm:$0xff]
  %v1780 = vld [vmem:[%s5 + $0x138] sm:$0xff]
  %v1781 = vld [vmem:[%s5 + $0x140] sm:$0xff]
  %v1782 = vld [vmem:[%s5 + $0x148] sm:$0xff]
  %v1783 = vld [vmem:[%s5 + $0x150] sm:$0xff]
  %v1784 = vld [vmem:[%s5 + $0x158] sm:$0xff]
  %v1785 = vld [vmem:[%s5 + $0x160] sm:$0xff]
  %v1786 = vld [vmem:[%s5 + $0x168] sm:$0xff]
  %v1787 = vld [vmem:[%s5 + $0x170] sm:$0xff]
  %v1788 = vld [vmem:[%s5 + $0x178] sm:$0xff]
  %v1789 = vld [vmem:[%s5 + $0x180] sm:$0xff]
  %v1790 = vld [vmem:[%s5 + $0x188] sm:$0xff]
  %v1791 = vld [vmem:[%s5 + $0x190] sm:$0xff]
  %v1792 = vld [vmem:[%s5 + $0x198] sm:$0xff]
  %v1793 = vld [vmem:[%s5 + $0x1a0] sm:$0xff]
  %v1794 = vld [vmem:[%s5 + $0x1a8] sm:$0xff]
  %v1795 = vld [vmem:[%s5 + $0x1b0] sm:$0xff]
  %v1796 = vld [vmem:[%s5 + $0x1b8] sm:$0xff]
  %v1797 = vld [vmem:[%s5 + $0x1c0] sm:$0xff]
  %v1798 = vld [vmem:[%s5 + $0x1c8] sm:$0xff]
  %v1799 = vld [vmem:[%s5 + $0x1d0] sm:$0xff]
  %v1800 = vld [vmem:[%s5 + $0x1d8] sm:$0xff]
  %v1801 = vld [vmem:[%s5 + $0x1e0] sm:$0xff]
  %v1802 = vld [vmem:[%s5 + $0x1e8] sm:$0xff]
  %v1803 = vld [vmem:[%s5 + $0x1f0] sm:$0xff]
  %v1804 = vld [vmem:[%s5 + $0x1f8] sm:$0xff]
  %v1805 = vld [vmem:[%s5 + $0x200] sm:$0xff]
  %v1806 = vld [vmem:[%s5 + $0x208] sm:$0xff]
  %v1807 = vld [vmem:[%s5 + $0x210] sm:$0xff]
  %v1808 = vld [vmem:[%s5 + $0x218] sm:$0xff]
  %v1809 = vld [vmem:[%s5 + $0x220] sm:$0xff]
  %v1810 = vld [vmem:[%s5 + $0x228] sm:$0xff]
  %v1811 = vld [vmem:[%s5 + $0x230] sm:$0xff]
  %v1812 = vld [vmem:[%s5 + $0x238] sm:$0xff]
  %v1813 = vld [vmem:[%s5 + $0x240] sm:$0xff]
  %v1814 = vld [vmem:[%s5 + $0x248] sm:$0xff]
  %v1815 = vld [vmem:[%s5 + $0x250] sm:$0xff]
  %v1816 = vld [vmem:[%s5 + $0x258] sm:$0xff]
  %v1817 = vld [vmem:[%s5 + $0x260] sm:$0xff]
  %v1818 = vld [vmem:[%s5 + $0x268] sm:$0xff]
  %v1819 = vld [vmem:[%s5 + $0x270] sm:$0xff]
  %v1820 = vld [vmem:[%s5 + $0x278] sm:$0xff]
  %v1821 = vld [vmem:[%s5 + $0x280] sm:$0xff]
  %v1822 = vld [vmem:[%s5 + $0x288] sm:$0xff]
  %v1823 = vld [vmem:[%s5 + $0x290] sm:$0xff]
  %v1824 = vld [vmem:[%s5 + $0x298] sm:$0xff]
  %v1825 = vld [vmem:[%s5 + $0x2a0] sm:$0xff]
  %v1826 = vld [vmem:[%s5 + $0x2a8] sm:$0xff]
  %v1827 = vld [vmem:[%s5 + $0x2b0] sm:$0xff]
  %v1828 = vld [vmem:[%s5 + $0x2b8] sm:$0xff]
  %v1829 = vld [vmem:[%s5 + $0x2c0] sm:$0xff]
  %v1830 = vld [vmem:[%s5 + $0x2c8] sm:$0xff]
  %v1831 = vld [vmem:[%s5 + $0x2d0] sm:$0xff]
  %v1832 = vld [vmem:[%s5 + $0x2d8] sm:$0xff]
  %v1833 = vld [vmem:[%s5 + $0x2e0] sm:$0xff]
  %v1834 = vld [vmem:[%s5 + $0x2e8] sm:$0xff]
  %v1835 = vld [vmem:[%s5 + $0x2f0] sm:$0xff]
  %v1836 = vld [vmem:[%s5 + $0x2f8] sm:$0xff]
  %v1837 = vld [vmem:[%s5 + $0x300] sm:$0xff]
  %v1838 = vld [vmem:[%s5 + $0x308] sm:$0xff]
  %v1839 = vld [vmem:[%s5 + $0x310] sm:$0xff]
  %v1840 = vld [vmem:[%s5 + $0x318] sm:$0xff]
  %v1841 = vld [vmem:[%s5 + $0x320] sm:$0xff]
  %v1842 = vld [vmem:[%s5 + $0x328] sm:$0xff]
  %v1843 = vld [vmem:[%s5 + $0x330] sm:$0xff]
  %v1844 = vld [vmem:[%s5 + $0x338] sm:$0xff]
  %v1845 = vld [vmem:[%s5 + $0x340] sm:$0xff]
  %v1846 = vld [vmem:[%s5 + $0x348] sm:$0xff]
  %v1847 = vld [vmem:[%s5 + $0x350] sm:$0xff]
  %v1848 = vld [vmem:[%s5 + $0x358] sm:$0xff]
  %v1849 = vld [vmem:[%s5 + $0x360] sm:$0xff]
  %v1850 = vld [vmem:[%s5 + $0x368] sm:$0xff]
  %v1851 = vld [vmem:[%s5 + $0x370] sm:$0xff]
  %v1852 = vld [vmem:[%s5 + $0x378] sm:$0xff]
  %v1853 = vld [vmem:[%s5 + $0x380] sm:$0xff]
  %v1854 = vld [vmem:[%s5 + $0x388] sm:$0xff]
  %v1855 = vld [vmem:[%s5 + $0x390] sm:$0xff]
  %v1856 = vld [vmem:[%s5 + $0x398] sm:$0xff]
  %v1857 = vld [vmem:[%s5 + $0x3a0] sm:$0xff]
  %v1858 = vld [vmem:[%s5 + $0x3a8] sm:$0xff]
  %v1859 = vld [vmem:[%s5 + $0x3b0] sm:$0xff]
  %v1860 = vld [vmem:[%s5 + $0x3b8] sm:$0xff]
  %v1861 = vld [vmem:[%s5 + $0x3c0] sm:$0xff]
  %v1862 = vld [vmem:[%s5 + $0x3c8] sm:$0xff]
  %v1863 = vld [vmem:[%s5 + $0x3d0] sm:$0xff]
  %v1864 = vld [vmem:[%s5 + $0x3d8] sm:$0xff]
  %v1865 = vld [vmem:[%s5 + $0x3e0] sm:$0xff]
  %v1866 = vld [vmem:[%s5 + $0x3e8] sm:$0xff]
  %v1867 = vld [vmem:[%s5 + $0x3f0] sm:$0xff]
  %v1868 = vld [vmem:[%s5 + $0x3f8] sm:$0xff]
  %v1869 = vld [vmem:[%s6] sm:$0x1]
  %v1871 = vlaneseq
  %v1872 = vshrl.u32 %v1871, 7
  %v1873 = vsub.s32 0, %v1872
  %v1874 = vrot.slane %v1869, %v1873
  %v1878 = vcombine.high %v1739, %v1739
  %v1880 = vunpack.c.l.s4 1983009808
  %v1881 = vunpack.c.0.s8 %v1880
  %v1882 = vlaneseq
  %v1883 = vshrl.u32 %v1882, 7
  %v1884 = vsub.s32 %v1881, %v1883
  %v1885 = vrot.slane %v1739, %v1884
  %v1887 = vunpack.c.l.s4 1983009808
  %v1888 = vunpack.c.0.s8 %v1887
  %v1889 = vlaneseq
  %v1890 = vshrl.u32 %v1889, 7
  %v1891 = vsub.s32 %v1888, %v1890
  %v1892 = vrot.slane %v1878, %v1891
  %v1893 = vcombine.high %v1885, %v1885
  %v1894 = vcombine.high %v1892, %v1892
  %v1895 = vcombine.high %v1740, %v1740
  %v1897 = vunpack.c.l.s4 1983009808
  %v1898 = vunpack.c.0.s8 %v1897
  %v1899 = vlaneseq
  %v1900 = vshrl.u32 %v1899, 7
  %v1901 = vsub.s32 %v1898, %v1900
  %v1902 = vrot.slane %v1740, %v1901
  %v1904 = vunpack.c.l.s4 1983009808
  %v1905 = vunpack.c.0.s8 %v1904
  %v1906 = vlaneseq
  %v1907 = vshrl.u32 %v1906, 7
  %v1908 = vsub.s32 %v1905, %v1907
  %v1909 = vrot.slane %v1895, %v1908
  %v1910 = vcombine.high %v1902, %v1902
  %v1911 = vcombine.high %v1909, %v1909
  %1920 = vmatprep.subr.mxu0 0.0
  %1921 = vmatpush1.msra.mxu0 %v1756
  %1922 = vmatprep.subr.mxu0 0.0
  %1923 = vmatpush1.msra.mxu0 %v1755
  %1924 = vmatprep.subr.mxu0 0.0
  %1925 = vmatpush1.msra.mxu0 %v1754
  %1926 = vmatprep.subr.mxu0 0.0
  %1927 = vmatpush1.msra.mxu0 %v1753
  %1928 = vmatprep.subr.mxu0 0.0
  %1929 = vmatpush1.msra.mxu0 %v1752
  %1930 = vmatprep.subr.mxu0 0.0
  %1931 = vmatpush1.msra.mxu0 %v1751
  %1932 = vmatprep.subr.mxu0 0.0
  %1933 = vmatpush1.msra.mxu0 %v1750
  %1934 = vmatprep.subr.mxu0 0.0
  %1935 = vmatpush1.msra.mxu0 %v1749
  %1936 = vmatprep.subr.mxu0 0.0
  %1937 = vmatpush1.msra.mxu0 %v1748
  %1938 = vmatprep.subr.mxu0 0.0
  %1939 = vmatpush1.msra.mxu0 %v1747
  %1940 = vmatprep.subr.mxu0 0.0
  %1941 = vmatpush1.msra.mxu0 %v1746
  %1942 = vmatprep.subr.mxu0 0.0
  %1943 = vmatpush1.msra.mxu0 %v1745
  %1944 = vmatprep.subr.mxu0 0.0
  %1945 = vmatpush1.msra.mxu0 %v1744
  %1946 = vmatprep.subr.mxu0 0.0
  %1947 = vmatpush1.msra.mxu0 %v1743
  %1948 = vmatprep.subr.mxu0 0.0
  %1949 = vmatpush1.msra.mxu0 %v1742
  %1950 = vmatprep.subr.mxu0 0.0
  %1951 = vmatpush1.msra.mxu0 %v1741
  %1952 = vmatprep.subr.mxu0 0.0
  %1953 = vmatpush2.msra.mxu0 %v1772
  %1954 = vmatprep.subr.mxu0 0.0
  %1955 = vmatpush2.msra.mxu0 %v1771
  %1956 = vmatprep.subr.mxu0 0.0
  %1957 = vmatpush2.msra.mxu0 %v1770
  %1958 = vmatprep.subr.mxu0 0.0
  %1959 = vmatpush2.msra.mxu0 %v1769
  %1960 = vmatprep.subr.mxu0 0.0
  %1961 = vmatpush2.msra.mxu0 %v1768
  %1962 = vmatprep.subr.mxu0 0.0
  %1963 = vmatpush2.msra.mxu0 %v1767
  %1964 = vmatprep.subr.mxu0 0.0
  %1965 = vmatpush2.msra.mxu0 %v1766
  %1966 = vmatprep.subr.mxu0 0.0
  %1967 = vmatpush2.msra.mxu0 %v1765
  %1968 = vmatprep.subr.mxu0 0.0
  %1969 = vmatpush2.msra.mxu0 %v1764
  %1970 = vmatprep.subr.mxu0 0.0
  %1971 = vmatpush2.msra.mxu0 %v1763
  %1972 = vmatprep.subr.mxu0 0.0
  %1973 = vmatpush2.msra.mxu0 %v1762
  %1974 = vmatprep.subr.mxu0 0.0
  %1975 = vmatpush2.msra.mxu0 %v1761
  %1976 = vmatprep.subr.mxu0 0.0
  %1977 = vmatpush2.msra.mxu0 %v1760
  %1978 = vmatprep.subr.mxu0 0.0
  %1979 = vmatpush2.msra.mxu0 %v1759
  %1980 = vmatprep.subr.mxu0 0.0
  %1981 = vmatpush2.msra.mxu0 %v1758
  %1982 = vmatprep.subr.mxu0 0.0
  %1983 = vmatpush2.msra.mxu0 %v1757
  %1984 = vmatprep.mubr.f32.mxu0 %v1893
  %1985 = vmatmul.mubr.f32.gmra.mxu0 %v1885
  %v1986 = vpop.f32.mrf.mxu0
  %v1987 = vadd.f32 %v1874, %v1986
  %v1988 = vpop.f32.mrf.mxu0
  %1989 = vdwg.mxu0
  %1990 = vmatprep.subr.mxu0 0.0
  %1991 = vmatpush1.msra.mxu0 %v1788
  %1992 = vmatprep.subr.mxu0 0.0
  %1993 = vmatpush1.msra.mxu0 %v1787
  %1994 = vmatprep.subr.mxu0 0.0
  %1995 = vmatpush1.msra.mxu0 %v1786
  %1996 = vmatprep.subr.mxu0 0.0
  %1997 = vmatpush1.msra.mxu0 %v1785
  %1998 = vmatprep.subr.mxu0 0.0
  %1999 = vmatpush1.msra.mxu0 %v1784
  %2000 = vmatprep.subr.mxu0 0.0
  %2001 = vmatpush1.msra.mxu0 %v1783
  %2002 = vmatprep.subr.mxu0 0.0
  %2003 = vmatpush1.msra.mxu0 %v1782
  %2004 = vmatprep.subr.mxu0 0.0
  %2005 = vmatpush1.msra.mxu0 %v1781
  %2006 = vmatprep.subr.mxu0 0.0
  %2007 = vmatpush1.msra.mxu0 %v1780
  %2008 = vmatprep.subr.mxu0 0.0
  %2009 = vmatpush1.msra.mxu0 %v1779
  %2010 = vmatprep.subr.mxu0 0.0
  %2011 = vmatpush1.msra.mxu0 %v1778
  %2012 = vmatprep.subr.mxu0 0.0
  %2013 = vmatpush1.msra.mxu0 %v1777
  %2014 = vmatprep.subr.mxu0 0.0
  %2015 = vmatpush1.msra.mxu0 %v1776
  %2016 = vmatprep.subr.mxu0 0.0
  %2017 = vmatpush1.msra.mxu0 %v1775
  %2018 = vmatprep.subr.mxu0 0.0
  %2019 = vmatpush1.msra.mxu0 %v1774
  %2020 = vmatprep.subr.mxu0 0.0
  %2021 = vmatpush1.msra.mxu0 %v1773
  %2022 = vmatprep.subr.mxu0 0.0
  %2023 = vmatpush2.msra.mxu0 %v1804
  %2024 = vmatprep.subr.mxu0 0.0
  %2025 = vmatpush2.msra.mxu0 %v1803
  %2026 = vmatprep.subr.mxu0 0.0
  %2027 = vmatpush2.msra.mxu0 %v1802
  %2028 = vmatprep.subr.mxu0 0.0
  %2029 = vmatpush2.msra.mxu0 %v1801
  %2030 = vmatprep.subr.mxu0 0.0
  %2031 = vmatpush2.msra.mxu0 %v1800
  %2032 = vmatprep.subr.mxu0 0.0
  %2033 = vmatpush2.msra.mxu0 %v1799
  %2034 = vmatprep.subr.mxu0 0.0
  %2035 = vmatpush2.msra.mxu0 %v1798
  %2036 = vmatprep.subr.mxu0 0.0
  %2037 = vmatpush2.msra.mxu0 %v1797
  %2038 = vmatprep.subr.mxu0 0.0
  %2039 = vmatpush2.msra.mxu0 %v1796
  %2040 = vmatprep.subr.mxu0 0.0
  %2041 = vmatpush2.msra.mxu0 %v1795
  %2042 = vmatprep.subr.mxu0 0.0
  %2043 = vmatpush2.msra.mxu0 %v1794
  %2044 = vmatprep.subr.mxu0 0.0
  %2045 = vmatpush2.msra.mxu0 %v1793
  %2046 = vmatprep.subr.mxu0 0.0
  %2047 = vmatpush2.msra.mxu0 %v1792
  %2048 = vmatprep.subr.mxu0 0.0
  %2049 = vmatpush2.msra.mxu0 %v1791
  %2050 = vmatprep.subr.mxu0 0.0
  %2051 = vmatpush2.msra.mxu0 %v1790
  %2052 = vmatprep.subr.mxu0 0.0
  %2053 = vmatpush2.msra.mxu0 %v1789
  %2054 = vmatprep.mubr.f32.mxu0 %v1894
  %2055 = vmatmul.mubr.f32.gmra.mxu0 %v1892
  %v2056 = vpop.f32.mrf.mxu0
  %v2057 = vadd.f32 %v1987, %v2056
  %v2058 = vpop.f32.mrf.mxu0
  %2059 = vdwg.mxu0
  %2060 = vmatprep.subr.mxu0 0.0
  %2061 = vmatpush1.msra.mxu0 %v1820
  %2062 = vmatprep.subr.mxu0 0.0
  %2063 = vmatpush1.msra.mxu0 %v1819
  %2064 = vmatprep.subr.mxu0 0.0
  %2065 = vmatpush1.msra.mxu0 %v1818
  %2066 = vmatprep.subr.mxu0 0.0
  %2067 = vmatpush1.msra.mxu0 %v1817
  %2068 = vmatprep.subr.mxu0 0.0
  %2069 = vmatpush1.msra.mxu0 %v1816
  %2070 = vmatprep.subr.mxu0 0.0
  %2071 = vmatpush1.msra.mxu0 %v1815
  %2072 = vmatprep.subr.mxu0 0.0
  %2073 = vmatpush1.msra.mxu0 %v1814
  %2074 = vmatprep.subr.mxu0 0.0
  %2075 = vmatpush1.msra.mxu0 %v1813
  %2076 = vmatprep.subr.mxu0 0.0
  %2077 = vmatpush1.msra.mxu0 %v1812
  %2078 = vmatprep.subr.mxu0 0.0
  %2079 = vmatpush1.msra.mxu0 %v1811
  %2080 = vmatprep.subr.mxu0 0.0
  %2081 = vmatpush1.msra.mxu0 %v1810
  %2082 = vmatprep.subr.mxu0 0.0
  %2083 = vmatpush1.msra.mxu0 %v1809
  %2084 = vmatprep.subr.mxu0 0.0
  %2085 = vmatpush1.msra.mxu0 %v1808
  %2086 = vmatprep.subr.mxu0 0.0
  %2087 = vmatpush1.msra.mxu0 %v1807
  %2088 = vmatprep.subr.mxu0 0.0
  %2089 = vmatpush1.msra.mxu0 %v1806
  %2090 = vmatprep.subr.mxu0 0.0
  %2091 = vmatpush1.msra.mxu0 %v1805
  %2092 = vmatprep.subr.mxu0 0.0
  %2093 = vmatpush2.msra.mxu0 %v1836
  %2094 = vmatprep.subr.mxu0 0.0
  %2095 = vmatpush2.msra.mxu0 %v1835
  %2096 = vmatprep.subr.mxu0 0.0
  %2097 = vmatpush2.msra.mxu0 %v1834
  %2098 = vmatprep.subr.mxu0 0.0
  %2099 = vmatpush2.msra.mxu0 %v1833
  %2100 = vmatprep.subr.mxu0 0.0
  %2101 = vmatpush2.msra.mxu0 %v1832
  %2102 = vmatprep.subr.mxu0 0.0
  %2103 = vmatpush2.msra.mxu0 %v1831
  %2104 = vmatprep.subr.mxu0 0.0
  %2105 = vmatpush2.msra.mxu0 %v1830
  %2106 = vmatprep.subr.mxu0 0.0
  %2107 = vmatpush2.msra.mxu0 %v1829
  %2108 = vmatprep.subr.mxu0 0.0
  %2109 = vmatpush2.msra.mxu0 %v1828
  %2110 = vmatprep.subr.mxu0 0.0
  %2111 = vmatpush2.msra.mxu0 %v1827
  %2112 = vmatprep.subr.mxu0 0.0
  %2113 = vmatpush2.msra.mxu0 %v1826
  %2114 = vmatprep.subr.mxu0 0.0
  %2115 = vmatpush2.msra.mxu0 %v1825
  %2116 = vmatprep.subr.mxu0 0.0
  %2117 = vmatpush2.msra.mxu0 %v1824
  %2118 = vmatprep.subr.mxu0 0.0
  %2119 = vmatpush2.msra.mxu0 %v1823
  %2120 = vmatprep.subr.mxu0 0.0
  %2121 = vmatpush2.msra.mxu0 %v1822
  %2122 = vmatprep.subr.mxu0 0.0
  %2123 = vmatpush2.msra.mxu0 %v1821
  %2124 = vmatprep.mubr.f32.mxu0 %v1910
  %2125 = vmatmul.mubr.f32.gmra.mxu0 %v1902
  %v2126 = vpop.f32.mrf.mxu0
  %v2127 = vadd.f32 %v2057, %v2126
  %v2128 = vpop.f32.mrf.mxu0
  %2129 = vdwg.mxu0
  %2130 = vmatprep.subr.mxu0 0.0
  %2131 = vmatpush1.msra.mxu0 %v1852
  %2132 = vmatprep.subr.mxu0 0.0
  %2133 = vmatpush1.msra.mxu0 %v1851
  %2134 = vmatprep.subr.mxu0 0.0
  %2135 = vmatpush1.msra.mxu0 %v1850
  %2136 = vmatprep.subr.mxu0 0.0
  %2137 = vmatpush1.msra.mxu0 %v1849
  %2138 = vmatprep.subr.mxu0 0.0
  %2139 = vmatpush1.msra.mxu0 %v1848
  %2140 = vmatprep.subr.mxu0 0.0
  %2141 = vmatpush1.msra.mxu0 %v1847
  %2142 = vmatprep.subr.mxu0 0.0
  %2143 = vmatpush1.msra.mxu0 %v1846
  %2144 = vmatprep.subr.mxu0 0.0
  %2145 = vmatpush1.msra.mxu0 %v1845
  %2146 = vmatprep.subr.mxu0 0.0
  %2147 = vmatpush1.msra.mxu0 %v1844
  %2148 = vmatprep.subr.mxu0 0.0
  %2149 = vmatpush1.msra.mxu0 %v1843
  %2150 = vmatprep.subr.mxu0 0.0
  %2151 = vmatpush1.msra.mxu0 %v1842
  %2152 = vmatprep.subr.mxu0 0.0
  %2153 = vmatpush1.msra.mxu0 %v1841
  %2154 = vmatprep.subr.mxu0 0.0
  %2155 = vmatpush1.msra.mxu0 %v1840
  %2156 = vmatprep.subr.mxu0 0.0
  %2157 = vmatpush1.msra.mxu0 %v1839
  %2158 = vmatprep.subr.mxu0 0.0
  %2159 = vmatpush1.msra.mxu0 %v1838
  %2160 = vmatprep.subr.mxu0 0.0
  %2161 = vmatpush1.msra.mxu0 %v1837
  %2162 = vmatprep.subr.mxu0 0.0
  %2163 = vmatpush2.msra.mxu0 %v1868
  %2164 = vmatprep.subr.mxu0 0.0
  %2165 = vmatpush2.msra.mxu0 %v1867
  %2166 = vmatprep.subr.mxu0 0.0
  %2167 = vmatpush2.msra.mxu0 %v1866
  %2168 = vmatprep.subr.mxu0 0.0
  %2169 = vmatpush2.msra.mxu0 %v1865
  %2170 = vmatprep.subr.mxu0 0.0
  %2171 = vmatpush2.msra.mxu0 %v1864
  %2172 = vmatprep.subr.mxu0 0.0
  %2173 = vmatpush2.msra.mxu0 %v1863
  %2174 = vmatprep.subr.mxu0 0.0
  %2175 = vmatpush2.msra.mxu0 %v1862
  %2176 = vmatprep.subr.mxu0 0.0
  %2177 = vmatpush2.msra.mxu0 %v1861
  %2178 = vmatprep.subr.mxu0 0.0
  %2179 = vmatpush2.msra.mxu0 %v1860
  %2180 = vmatprep.subr.mxu0 0.0
  %2181 = vmatpush2.msra.mxu0 %v1859
  %2182 = vmatprep.subr.mxu0 0.0
  %2183 = vmatpush2.msra.mxu0 %v1858
  %2184 = vmatprep.subr.mxu0 0.0
  %2185 = vmatpush2.msra.mxu0 %v1857
  %2186 = vmatprep.subr.mxu0 0.0
  %2187 = vmatpush2.msra.mxu0 %v1856
  %2188 = vmatprep.subr.mxu0 0.0
  %2189 = vmatpush2.msra.mxu0 %v1855
  %2190 = vmatprep.subr.mxu0 0.0
  %2191 = vmatpush2.msra.mxu0 %v1854
  %2192 = vmatprep.subr.mxu0 0.0
  %2193 = vmatpush2.msra.mxu0 %v1853
  %2194 = vmatprep.mubr.f32.mxu0 %v1911
  %2195 = vmatmul.mubr.f32.gmra.mxu0 %v1909
  %v2196 = vpop.f32.mrf.mxu0
  %v2197 = vadd.f32 %v2127, %v2196
  %v2198 = vpop.f32.mrf.mxu0
  %2199 = vdwg.mxu0
  %v2200 = vmax.f32 %v2197, 0.0
  %v2201 = vld [vmem:[%s7] sm:$0x1]
  %v2203 = vlaneseq
  %v2204 = vshrl.u32 %v2203, 7
  %v2205 = vsub.s32 0, %v2204
  %v2206 = vrot.slane %v2201, %v2205
  %v2208 = vmul.f32 %v2200, %v2206
  %vm2209 = vcmask 517120
  %v2210 = vsel %vm2209, %v2208, 0.0
  %2211 = vadd.xlane.f32.xlu0 %v2210
  %v2212 = vpop.xlane.xlu0 %2211
  %v2213 = vld [vmem:[#allocation3] sm:$0x1]
  %v2215 = vlaneseq
  %v2216 = vshrl.u32 %v2215, 7
  %v2217 = vsub.s32 0, %v2216
  %v2218 = vrot.slane %v2213, %v2217
  %v2220 = vadd.f32 %v2212, %v2218
  %vm2221 = vcmask 1024
  %2222 = vst.msk [vmem:[%s9] sm:$0x3] %vm2221, %v2220
  // Predicated region
  $region38: #{tpu_custom_call.1} parent=0 // pred_check
    _
  $region39: #{tpu_custom_call.1} parent=0 // pred_check_branch
    %2224 = sbr.rel (0) target = $region41
  $region40: #{tpu_custom_call.1} parent=0 // pred_region
    _
  $region41: #{tpu_custom_call.1} parent=0 // pred_fallthru
    _
  // Predicated region
  $region42: #{tpu_custom_call.1} parent=0 // pred_check
    _
  $region43: #{tpu_custom_call.1} parent=0 // pred_check_branch
    %2226 = sbr.rel (0) target = $region45
  $region44: #{tpu_custom_call.1} parent=0 // pred_region
    _
  $region45: #{tpu_custom_call.1} parent=0 // pred_fallthru
    _

</llo_original>
